<compile_context>
chip_gen: v6e
topology: v6e:2x2x1
jax: 0.10.0
libtpu: 0.0.40
codegen_flags: <defaults>
</compile_context>

<pallas_src>
import functools
import math

import jax
import jax.numpy as jnp
from jax.experimental import pallas as pl
from jax.experimental.pallas import tpu as pltpu


def _embed_pe_kernel(ids_ref, table_hbm, pe_ref, out_ref, gather_buf, sems,
                     *, scale, tile_len, batch):
    """Double-buffered DMA row-gather + sqrt(dim) scale + positional add."""
    i = pl.program_id(0)
    n = pl.num_programs(0)
    slot = i % 2

    def issue_gather(tile_idx, dst_slot):
        row_base = tile_idx * (tile_len * batch)   # flat (seq*batch) offset
        for s in range(tile_len):
            for b in range(batch):
                tok = ids_ref[row_base + s * batch + b]     # SMEM scalar read
                pltpu.make_async_copy(
                    table_hbm.at[tok],                       # (dim,) row in HBM
                    gather_buf.at[dst_slot, s, b],           # (dim,) row in VMEM
                    sems.at[dst_slot, s, b],
                ).start()

    # Prologue: the first tile has nobody to prefetch it, gather it ourselves.
    @pl.when(i == 0)
    def _():
        issue_gather(0, slot)

    # Prefetch the next tile's rows into the other slot (hidden behind this
    # step's wait / compute / auto-pipelined writeback).
    @pl.when(i + 1 < n)
    def _():
        issue_gather(i + 1, 1 - slot)

    # Wait for this tile's gathers (issued at step i-1, or in the prologue).
    for s in range(tile_len):
        for b in range(batch):
            pltpu.make_async_copy(
                table_hbm.at[0],                             # shape-only dummy src
                gather_buf.at[slot, s, b],
                sems.at[slot, s, b],
            ).wait()

    emb = gather_buf[slot]                                   # (tile_len, batch, dim)
    pe = pe_ref[...]                                         # (tile_len, dim)
    out_ref[...] = (emb * scale + pe[:, None, :]).astype(out_ref.dtype)
    # TODO(synk): dropout omitted (p=0 in this config; identity at inference).


def make_positional_encoding(max_len, dim):
    """Sinusoidal PE table [max_len, dim] matching the PyTorch reference."""
    position = jnp.arange(0.0, max_len, dtype=jnp.float32)[:, None]        # (L, 1)
    div_term = jnp.exp(
        jnp.arange(0.0, dim, 2.0, dtype=jnp.float32) * -(math.log(10000.0) / dim)
    )                                                                       # (D/2,)
    angles = position * div_term[None, :]                                   # (L, D/2)
    pe = jnp.zeros((max_len, dim), dtype=jnp.float32)
    pe = pe.at[:, 0::2].set(jnp.sin(angles))
    pe = pe.at[:, 1::2].set(jnp.cos(angles))
    return pe


def embeddings_forward(token_ids, word_lut, pe_table, *, tile_len=8):
    """
    token_ids : int32   [len, batch, 1]   (values must be in [0, vocab))
    word_lut  : float32 [vocab, dim]      (padding row already zeroed)
    pe_table  : float32 [max_len, dim]
    returns   : float32 [len, batch, dim]
    """
    seq_len, batch, nfeat = token_ids.shape
    assert nfeat == 1, "this config uses word embeddings only"
    vocab, dim = word_lut.shape
    assert seq_len % tile_len == 0, "seq_len must be a multiple of tile_len"
    assert pe_table.shape[0] >= seq_len

    ids_flat = token_ids[:, :, 0].reshape(seq_len * batch).astype(jnp.int32)
    scale = float(math.sqrt(dim))
    n_tiles = seq_len // tile_len

    kernel = functools.partial(
        _embed_pe_kernel, scale=scale, tile_len=tile_len, batch=batch
    )

    grid_spec = pltpu.PrefetchScalarGridSpec(
        num_scalar_prefetch=1,                      # ids_flat -> SMEM
        grid=(n_tiles,),
        in_specs=[
            pl.BlockSpec(memory_space=pl.ANY),                       # word_lut in HBM
            pl.BlockSpec((tile_len, dim), lambda i, ids: (i, 0)),    # pe seq rows
        ],
        out_specs=pl.BlockSpec((tile_len, batch, dim), lambda i, ids: (i, 0, 0)),
        scratch_shapes=[
            pltpu.VMEM((2, tile_len, batch, dim), word_lut.dtype),   # double-buffered gather
            pltpu.SemaphoreType.DMA((2, tile_len, batch)),           # one sem per row DMA
        ],
    )

    out = pl.pallas_call(
        kernel,
        grid_spec=grid_spec,
        out_shape=jax.ShapeDtypeStruct((seq_len, batch, dim), word_lut.dtype),
        compiler_params=pltpu.CompilerParams(
            # The grid axis carries a cross-step DMA prefetch -> must stay
            # sequential (a megacore split would break the carried slot).
            dimension_semantics=("arbitrary",),
        ),
    )(ids_flat, word_lut, pe_table)
    return out


if __name__ == "__main__":
    # Small, module-consistent shapes.
    SEQ_LEN = 16
    BATCH = 2
    NFEAT = 1
    VOCAB = 100
    DIM = 128      # lane-dense output (last dim a multiple of 128)
    PAD_IDX = 1
    MAX_LEN = 64
    TILE_LEN = 8   # -> grid of 2 sequence tiles

    key = jax.random.PRNGKey(0)
    k_w, k_i = jax.random.split(key)

    # Deterministic parameter init (nn.Embedding ~ N(0,1); padding row zeroed).
    word_lut = jax.random.normal(k_w, (VOCAB, DIM), dtype=jnp.float32)
    word_lut = word_lut.at[PAD_IDX].set(0.0)

    pe_table = make_positional_encoding(MAX_LEN, DIM)

    # Input indices [len, batch, nfeat], include a padding token.
    token_ids = jax.random.randint(
        k_i, (SEQ_LEN, BATCH, NFEAT), 0, VOCAB, dtype=jnp.int32
    )
    token_ids = token_ids.at[0, 0, 0].set(PAD_IDX)

    out = embeddings_forward(token_ids, word_lut, pe_table, tile_len=TILE_LEN)
    out = jax.block_until_ready(out)

    # Pure-JAX reference check.
    ref = word_lut[token_ids[:, :, 0]] * math.sqrt(DIM) + pe_table[:SEQ_LEN][:, None, :]
    assert out.shape == (SEQ_LEN, BATCH, DIM)
    assert jnp.allclose(out, ref, atol=1e-5, rtol=1e-5), float(
        jnp.max(jnp.abs(out - ref))
    )

    print("KERNEL_OK")
</pallas_src>

<mosaic_0001>
module attributes {stable_mosaic.version = 11 : i64} {
  func.func @_embed_pe_kernel(%arg0: i32, %arg1: memref<32xi32, #tpu.memory_space<smem>>, %arg2: memref<100x128xf32, #tpu.memory_space<any>>, %arg3: memref<8x128xf32, #tpu.memory_space<vmem>>, %arg4: memref<8x2x128xf32, #tpu.memory_space<vmem>>, %arg5: memref<2x8x2x128xf32, #tpu.memory_space<vmem>>, %arg6: memref<2x8x2x!tpu.dma_semaphore, #tpu.memory_space<semaphore_mem>>) attributes {dimension_semantics = [#tpu.dimension_semantics<arbitrary>], iteration_bounds = array<i64: 2>, scalar_prefetch = 1 : i64, scratch_operands = 2 : i64, tpu.core_type = #tpu.core_type<tc>, window_params = [{}, {transform_indices = @transform_1, window_bounds = array<i64: 8, 128>}, {transform_indices = @transform_2, window_bounds = array<i64: 8, 2, 128>}]} {
    %c2_i32 = arith.constant 2 : i32
    %c0_i32 = arith.constant 0 : i32
    %0 = arith.cmpi eq, %c2_i32, %c0_i32 : i32
    %c1_i32 = arith.constant 1 : i32
    %1 = arith.select %0, %c1_i32, %c2_i32 : i32
    %2 = arith.remsi %arg0, %1 : i32
    %c0_i32_0 = arith.constant 0 : i32
    %3 = arith.cmpi ne, %2, %c0_i32_0 : i32
    %c0_i32_1 = arith.constant 0 : i32
    %4 = arith.cmpi slt, %2, %c0_i32_1 : i32
    %c0_i32_2 = arith.constant 0 : i32
    %5 = arith.cmpi slt, %1, %c0_i32_2 : i32
    %6 = arith.xori %4, %5 : i1
    %7 = arith.andi %6, %3 : i1
    %8 = arith.addi %2, %1 : i32
    %9 = arith.select %7, %8, %2 : i32
    %c0_i32_3 = arith.constant 0 : i32
    %10 = arith.cmpi eq, %arg0, %c0_i32_3 : i32
    %11 = arith.extui %10 : i1 to i32
    %c0_i32_4 = arith.constant 0 : i32
    %12 = arith.cmpi ne, %11, %c0_i32_4 : i32
    scf.if %12 {
      %c0_122 = arith.constant 0 : index
      %123 = memref.load %arg1[%c0_122] : memref<32xi32, #tpu.memory_space<smem>>
      %c0_i32_123 = arith.constant 0 : i32
      %c0_i32_124 = arith.constant 0 : i32
      %c0_i32_125 = arith.constant 0 : i32
      %c0_i32_126 = arith.constant 0 : i32
      %c0_i32_127 = arith.constant 0 : i32
      %124 = tpu.memref_slice %arg2[%123, %c0_i32_127] : memref<100x128xf32, #tpu.memory_space<any>> -> memref<1x128xf32, #tpu.memory_space<any>>
      %125 = tpu.memref_squeeze %124 : memref<1x128xf32, #tpu.memory_space<any>> -> memref<128xf32, #tpu.memory_space<any>>
      %c0_i32_128 = arith.constant 0 : i32
      %126 = tpu.memref_slice %arg5[%9, %c0_i32_123, %c0_i32_124, %c0_i32_128] : memref<2x8x2x128xf32, #tpu.memory_space<vmem>> -> memref<1x1x1x128xf32, #tpu.memory_space<vmem>>
      %127 = tpu.memref_squeeze %126 : memref<1x1x1x128xf32, #tpu.memory_space<vmem>> -> memref<128xf32, #tpu.memory_space<vmem>>
      %128 = tpu.memref_slice %arg6[%9, %c0_i32_125, %c0_i32_126] : memref<2x8x2x!tpu.dma_semaphore, #tpu.memory_space<semaphore_mem>> -> memref<1x1x1x!tpu.dma_semaphore, #tpu.memory_space<semaphore_mem>>
      %129 = tpu.memref_squeeze %128 : memref<1x1x1x!tpu.dma_semaphore, #tpu.memory_space<semaphore_mem>> -> memref<!tpu.dma_semaphore, #tpu.memory_space<semaphore_mem>>
      tpu.enqueue_dma source(%125 : memref<128xf32, #tpu.memory_space<any>>) target(%127 : memref<128xf32, #tpu.memory_space<vmem>>) target_semaphore(%129 : memref<!tpu.dma_semaphore, #tpu.memory_space<semaphore_mem>>)
      %c1 = arith.constant 1 : index
      %130 = memref.load %arg1[%c1] : memref<32xi32, #tpu.memory_space<smem>>
      %c0_i32_129 = arith.constant 0 : i32
      %c1_i32_130 = arith.constant 1 : i32
      %c0_i32_131 = arith.constant 0 : i32
      %c1_i32_132 = arith.constant 1 : i32
      %c0_i32_133 = arith.constant 0 : i32
      %131 = tpu.memref_slice %arg2[%130, %c0_i32_133] : memref<100x128xf32, #tpu.memory_space<any>> -> memref<1x128xf32, #tpu.memory_space<any>>
      %132 = tpu.memref_squeeze %131 : memref<1x128xf32, #tpu.memory_space<any>> -> memref<128xf32, #tpu.memory_space<any>>
      %c0_i32_134 = arith.constant 0 : i32
      %133 = tpu.memref_slice %arg5[%9, %c0_i32_129, %c1_i32_130, %c0_i32_134] : memref<2x8x2x128xf32, #tpu.memory_space<vmem>> -> memref<1x1x1x128xf32, #tpu.memory_space<vmem>>
      %134 = tpu.memref_squeeze %133 : memref<1x1x1x128xf32, #tpu.memory_space<vmem>> -> memref<128xf32, #tpu.memory_space<vmem>>
      %135 = tpu.memref_slice %arg6[%9, %c0_i32_131, %c1_i32_132] : memref<2x8x2x!tpu.dma_semaphore, #tpu.memory_space<semaphore_mem>> -> memref<1x1x1x!tpu.dma_semaphore, #tpu.memory_space<semaphore_mem>>
      %136 = tpu.memref_squeeze %135 : memref<1x1x1x!tpu.dma_semaphore, #tpu.memory_space<semaphore_mem>> -> memref<!tpu.dma_semaphore, #tpu.memory_space<semaphore_mem>>
      tpu.enqueue_dma source(%132 : memref<128xf32, #tpu.memory_space<any>>) target(%134 : memref<128xf32, #tpu.memory_space<vmem>>) target_semaphore(%136 : memref<!tpu.dma_semaphore, #tpu.memory_space<semaphore_mem>>)
      %c2 = arith.constant 2 : index
      %137 = memref.load %arg1[%c2] : memref<32xi32, #tpu.memory_space<smem>>
      %c1_i32_135 = arith.constant 1 : i32
      %c0_i32_136 = arith.constant 0 : i32
      %c1_i32_137 = arith.constant 1 : i32
      %c0_i32_138 = arith.constant 0 : i32
      %c0_i32_139 = arith.constant 0 : i32
      %138 = tpu.memref_slice %arg2[%137, %c0_i32_139] : memref<100x128xf32, #tpu.memory_space<any>> -> memref<1x128xf32, #tpu.memory_space<any>>
      %139 = tpu.memref_squeeze %138 : memref<1x128xf32, #tpu.memory_space<any>> -> memref<128xf32, #tpu.memory_space<any>>
      %c0_i32_140 = arith.constant 0 : i32
      %140 = tpu.memref_slice %arg5[%9, %c1_i32_135, %c0_i32_136, %c0_i32_140] : memref<2x8x2x128xf32, #tpu.memory_space<vmem>> -> memref<1x1x1x128xf32, #tpu.memory_space<vmem>>
      %141 = tpu.memref_squeeze %140 : memref<1x1x1x128xf32, #tpu.memory_space<vmem>> -> memref<128xf32, #tpu.memory_space<vmem>>
      %142 = tpu.memref_slice %arg6[%9, %c1_i32_137, %c0_i32_138] : memref<2x8x2x!tpu.dma_semaphore, #tpu.memory_space<semaphore_mem>> -> memref<1x1x1x!tpu.dma_semaphore, #tpu.memory_space<semaphore_mem>>
      %143 = tpu.memref_squeeze %142 : memref<1x1x1x!tpu.dma_semaphore, #tpu.memory_space<semaphore_mem>> -> memref<!tpu.dma_semaphore, #tpu.memory_space<semaphore_mem>>
      tpu.enqueue_dma source(%139 : memref<128xf32, #tpu.memory_space<any>>) target(%141 : memref<128xf32, #tpu.memory_space<vmem>>) target_semaphore(%143 : memref<!tpu.dma_semaphore, #tpu.memory_space<semaphore_mem>>)
      %c3 = arith.constant 3 : index
      %144 = memref.load %arg1[%c3] : memref<32xi32, #tpu.memory_space<smem>>
      %c1_i32_141 = arith.constant 1 : i32
      %c1_i32_142 = arith.constant 1 : i32
      %c1_i32_143 = arith.constant 1 : i32
      %c1_i32_144 = arith.constant 1 : i32
      %c0_i32_145 = arith.constant 0 : i32
      %145 = tpu.memref_slice %arg2[%144, %c0_i32_145] : memref<100x128xf32, #tpu.memory_space<any>> -> memref<1x128xf32, #tpu.memory_space<any>>
      %146 = tpu.memref_squeeze %145 : memref<1x128xf32, #tpu.memory_space<any>> -> memref<128xf32, #tpu.memory_space<any>>
      %c0_i32_146 = arith.constant 0 : i32
      %147 = tpu.memref_slice %arg5[%9, %c1_i32_141, %c1_i32_142, %c0_i32_146] : memref<2x8x2x128xf32, #tpu.memory_space<vmem>> -> memref<1x1x1x128xf32, #tpu.memory_space<vmem>>
      %148 = tpu.memref_squeeze %147 : memref<1x1x1x128xf32, #tpu.memory_space<vmem>> -> memref<128xf32, #tpu.memory_space<vmem>>
      %149 = tpu.memref_slice %arg6[%9, %c1_i32_143, %c1_i32_144] : memref<2x8x2x!tpu.dma_semaphore, #tpu.memory_space<semaphore_mem>> -> memref<1x1x1x!tpu.dma_semaphore, #tpu.memory_space<semaphore_mem>>
      %150 = tpu.memref_squeeze %149 : memref<1x1x1x!tpu.dma_semaphore, #tpu.memory_space<semaphore_mem>> -> memref<!tpu.dma_semaphore, #tpu.memory_space<semaphore_mem>>
      tpu.enqueue_dma source(%146 : memref<128xf32, #tpu.memory_space<any>>) target(%148 : memref<128xf32, #tpu.memory_space<vmem>>) target_semaphore(%150 : memref<!tpu.dma_semaphore, #tpu.memory_space<semaphore_mem>>)
      %c4 = arith.constant 4 : index
      %151 = memref.load %arg1[%c4] : memref<32xi32, #tpu.memory_space<smem>>
      %c2_i32_147 = arith.constant 2 : i32
      %c0_i32_148 = arith.constant 0 : i32
      %c2_i32_149 = arith.constant 2 : i32
      %c0_i32_150 = arith.constant 0 : i32
      %c0_i32_151 = arith.constant 0 : i32
      %152 = tpu.memref_slice %arg2[%151, %c0_i32_151] : memref<100x128xf32, #tpu.memory_space<any>> -> memref<1x128xf32, #tpu.memory_space<any>>
      %153 = tpu.memref_squeeze %152 : memref<1x128xf32, #tpu.memory_space<any>> -> memref<128xf32, #tpu.memory_space<any>>
      %c0_i32_152 = arith.constant 0 : i32
      %154 = tpu.memref_slice %arg5[%9, %c2_i32_147, %c0_i32_148, %c0_i32_152] : memref<2x8x2x128xf32, #tpu.memory_space<vmem>> -> memref<1x1x1x128xf32, #tpu.memory_space<vmem>>
      %155 = tpu.memref_squeeze %154 : memref<1x1x1x128xf32, #tpu.memory_space<vmem>> -> memref<128xf32, #tpu.memory_space<vmem>>
      %156 = tpu.memref_slice %arg6[%9, %c2_i32_149, %c0_i32_150] : memref<2x8x2x!tpu.dma_semaphore, #tpu.memory_space<semaphore_mem>> -> memref<1x1x1x!tpu.dma_semaphore, #tpu.memory_space<semaphore_mem>>
      %157 = tpu.memref_squeeze %156 : memref<1x1x1x!tpu.dma_semaphore, #tpu.memory_space<semaphore_mem>> -> memref<!tpu.dma_semaphore, #tpu.memory_space<semaphore_mem>>
      tpu.enqueue_dma source(%153 : memref<128xf32, #tpu.memory_space<any>>) target(%155 : memref<128xf32, #tpu.memory_space<vmem>>) target_semaphore(%157 : memref<!tpu.dma_semaphore, #tpu.memory_space<semaphore_mem>>)
      %c5 = arith.constant 5 : index
      %158 = memref.load %arg1[%c5] : memref<32xi32, #tpu.memory_space<smem>>
      %c2_i32_153 = arith.constant 2 : i32
      %c1_i32_154 = arith.constant 1 : i32
      %c2_i32_155 = arith.constant 2 : i32
      %c1_i32_156 = arith.constant 1 : i32
      %c0_i32_157 = arith.constant 0 : i32
      %159 = tpu.memref_slice %arg2[%158, %c0_i32_157] : memref<100x128xf32, #tpu.memory_space<any>> -> memref<1x128xf32, #tpu.memory_space<any>>
      %160 = tpu.memref_squeeze %159 : memref<1x128xf32, #tpu.memory_space<any>> -> memref<128xf32, #tpu.memory_space<any>>
      %c0_i32_158 = arith.constant 0 : i32
      %161 = tpu.memref_slice %arg5[%9, %c2_i32_153, %c1_i32_154, %c0_i32_158] : memref<2x8x2x128xf32, #tpu.memory_space<vmem>> -> memref<1x1x1x128xf32, #tpu.memory_space<vmem>>
      %162 = tpu.memref_squeeze %161 : memref<1x1x1x128xf32, #tpu.memory_space<vmem>> -> memref<128xf32, #tpu.memory_space<vmem>>
      %163 = tpu.memref_slice %arg6[%9, %c2_i32_155, %c1_i32_156] : memref<2x8x2x!tpu.dma_semaphore, #tpu.memory_space<semaphore_mem>> -> memref<1x1x1x!tpu.dma_semaphore, #tpu.memory_space<semaphore_mem>>
      %164 = tpu.memref_squeeze %163 : memref<1x1x1x!tpu.dma_semaphore, #tpu.memory_space<semaphore_mem>> -> memref<!tpu.dma_semaphore, #tpu.memory_space<semaphore_mem>>
      tpu.enqueue_dma source(%160 : memref<128xf32, #tpu.memory_space<any>>) target(%162 : memref<128xf32, #tpu.memory_space<vmem>>) target_semaphore(%164 : memref<!tpu.dma_semaphore, #tpu.memory_space<semaphore_mem>>)
      %c6 = arith.constant 6 : index
      %165 = memref.load %arg1[%c6] : memref<32xi32, #tpu.memory_space<smem>>
      %c3_i32_159 = arith.constant 3 : i32
      %c0_i32_160 = arith.constant 0 : i32
      %c3_i32_161 = arith.constant 3 : i32
      %c0_i32_162 = arith.constant 0 : i32
      %c0_i32_163 = arith.constant 0 : i32
      %166 = tpu.memref_slice %arg2[%165, %c0_i32_163] : memref<100x128xf32, #tpu.memory_space<any>> -> memref<1x128xf32, #tpu.memory_space<any>>
      %167 = tpu.memref_squeeze %166 : memref<1x128xf32, #tpu.memory_space<any>> -> memref<128xf32, #tpu.memory_space<any>>
      %c0_i32_164 = arith.constant 0 : i32
      %168 = tpu.memref_slice %arg5[%9, %c3_i32_159, %c0_i32_160, %c0_i32_164] : memref<2x8x2x128xf32, #tpu.memory_space<vmem>> -> memref<1x1x1x128xf32, #tpu.memory_space<vmem>>
      %169 = tpu.memref_squeeze %168 : memref<1x1x1x128xf32, #tpu.memory_space<vmem>> -> memref<128xf32, #tpu.memory_space<vmem>>
      %170 = tpu.memref_slice %arg6[%9, %c3_i32_161, %c0_i32_162] : memref<2x8x2x!tpu.dma_semaphore, #tpu.memory_space<semaphore_mem>> -> memref<1x1x1x!tpu.dma_semaphore, #tpu.memory_space<semaphore_mem>>
      %171 = tpu.memref_squeeze %170 : memref<1x1x1x!tpu.dma_semaphore, #tpu.memory_space<semaphore_mem>> -> memref<!tpu.dma_semaphore, #tpu.memory_space<semaphore_mem>>
      tpu.enqueue_dma source(%167 : memref<128xf32, #tpu.memory_space<any>>) target(%169 : memref<128xf32, #tpu.memory_space<vmem>>) target_semaphore(%171 : memref<!tpu.dma_semaphore, #tpu.memory_space<semaphore_mem>>)
      %c7 = arith.constant 7 : index
      %172 = memref.load %arg1[%c7] : memref<32xi32, #tpu.memory_space<smem>>
      %c3_i32_165 = arith.constant 3 : i32
      %c1_i32_166 = arith.constant 1 : i32
      %c3_i32_167 = arith.constant 3 : i32
      %c1_i32_168 = arith.constant 1 : i32
      %c0_i32_169 = arith.constant 0 : i32
      %173 = tpu.memref_slice %arg2[%172, %c0_i32_169] : memref<100x128xf32, #tpu.memory_space<any>> -> memref<1x128xf32, #tpu.memory_space<any>>
      %174 = tpu.memref_squeeze %173 : memref<1x128xf32, #tpu.memory_space<any>> -> memref<128xf32, #tpu.memory_space<any>>
      %c0_i32_170 = arith.constant 0 : i32
      %175 = tpu.memref_slice %arg5[%9, %c3_i32_165, %c1_i32_166, %c0_i32_170] : memref<2x8x2x128xf32, #tpu.memory_space<vmem>> -> memref<1x1x1x128xf32, #tpu.memory_space<vmem>>
      %176 = tpu.memref_squeeze %175 : memref<1x1x1x128xf32, #tpu.memory_space<vmem>> -> memref<128xf32, #tpu.memory_space<vmem>>
      %177 = tpu.memref_slice %arg6[%9, %c3_i32_167, %c1_i32_168] : memref<2x8x2x!tpu.dma_semaphore, #tpu.memory_space<semaphore_mem>> -> memref<1x1x1x!tpu.dma_semaphore, #tpu.memory_space<semaphore_mem>>
      %178 = tpu.memref_squeeze %177 : memref<1x1x1x!tpu.dma_semaphore, #tpu.memory_space<semaphore_mem>> -> memref<!tpu.dma_semaphore, #tpu.memory_space<semaphore_mem>>
      tpu.enqueue_dma source(%174 : memref<128xf32, #tpu.memory_space<any>>) target(%176 : memref<128xf32, #tpu.memory_space<vmem>>) target_semaphore(%178 : memref<!tpu.dma_semaphore, #tpu.memory_space<semaphore_mem>>)
      %c8 = arith.constant 8 : index
      %179 = memref.load %arg1[%c8] : memref<32xi32, #tpu.memory_space<smem>>
      %c4_i32_171 = arith.constant 4 : i32
      %c0_i32_172 = arith.constant 0 : i32
      %c4_i32_173 = arith.constant 4 : i32
      %c0_i32_174 = arith.constant 0 : i32
      %c0_i32_175 = arith.constant 0 : i32
      %180 = tpu.memref_slice %arg2[%179, %c0_i32_175] : memref<100x128xf32, #tpu.memory_space<any>> -> memref<1x128xf32, #tpu.memory_space<any>>
      %181 = tpu.memref_squeeze %180 : memref<1x128xf32, #tpu.memory_space<any>> -> memref<128xf32, #tpu.memory_space<any>>
      %c0_i32_176 = arith.constant 0 : i32
      %182 = tpu.memref_slice %arg5[%9, %c4_i32_171, %c0_i32_172, %c0_i32_176] : memref<2x8x2x128xf32, #tpu.memory_space<vmem>> -> memref<1x1x1x128xf32, #tpu.memory_space<vmem>>
      %183 = tpu.memref_squeeze %182 : memref<1x1x1x128xf32, #tpu.memory_space<vmem>> -> memref<128xf32, #tpu.memory_space<vmem>>
      %184 = tpu.memref_slice %arg6[%9, %c4_i32_173, %c0_i32_174] : memref<2x8x2x!tpu.dma_semaphore, #tpu.memory_space<semaphore_mem>> -> memref<1x1x1x!tpu.dma_semaphore, #tpu.memory_space<semaphore_mem>>
      %185 = tpu.memref_squeeze %184 : memref<1x1x1x!tpu.dma_semaphore, #tpu.memory_space<semaphore_mem>> -> memref<!tpu.dma_semaphore, #tpu.memory_space<semaphore_mem>>
      tpu.enqueue_dma source(%181 : memref<128xf32, #tpu.memory_space<any>>) target(%183 : memref<128xf32, #tpu.memory_space<vmem>>) target_semaphore(%185 : memref<!tpu.dma_semaphore, #tpu.memory_space<semaphore_mem>>)
      %c9 = arith.constant 9 : index
      %186 = memref.load %arg1[%c9] : memref<32xi32, #tpu.memory_space<smem>>
      %c4_i32_177 = arith.constant 4 : i32
      %c1_i32_178 = arith.constant 1 : i32
      %c4_i32_179 = arith.constant 4 : i32
      %c1_i32_180 = arith.constant 1 : i32
      %c0_i32_181 = arith.constant 0 : i32
      %187 = tpu.memref_slice %arg2[%186, %c0_i32_181] : memref<100x128xf32, #tpu.memory_space<any>> -> memref<1x128xf32, #tpu.memory_space<any>>
      %188 = tpu.memref_squeeze %187 : memref<1x128xf32, #tpu.memory_space<any>> -> memref<128xf32, #tpu.memory_space<any>>
      %c0_i32_182 = arith.constant 0 : i32
      %189 = tpu.memref_slice %arg5[%9, %c4_i32_177, %c1_i32_178, %c0_i32_182] : memref<2x8x2x128xf32, #tpu.memory_space<vmem>> -> memref<1x1x1x128xf32, #tpu.memory_space<vmem>>
      %190 = tpu.memref_squeeze %189 : memref<1x1x1x128xf32, #tpu.memory_space<vmem>> -> memref<128xf32, #tpu.memory_space<vmem>>
      %191 = tpu.memref_slice %arg6[%9, %c4_i32_179, %c1_i32_180] : memref<2x8x2x!tpu.dma_semaphore, #tpu.memory_space<semaphore_mem>> -> memref<1x1x1x!tpu.dma_semaphore, #tpu.memory_space<semaphore_mem>>
      %192 = tpu.memref_squeeze %191 : memref<1x1x1x!tpu.dma_semaphore, #tpu.memory_space<semaphore_mem>> -> memref<!tpu.dma_semaphore, #tpu.memory_space<semaphore_mem>>
      tpu.enqueue_dma source(%188 : memref<128xf32, #tpu.memory_space<any>>) target(%190 : memref<128xf32, #tpu.memory_space<vmem>>) target_semaphore(%192 : memref<!tpu.dma_semaphore, #tpu.memory_space<semaphore_mem>>)
      %c10 = arith.constant 10 : index
      %193 = memref.load %arg1[%c10] : memref<32xi32, #tpu.memory_space<smem>>
      %c5_i32_183 = arith.constant 5 : i32
      %c0_i32_184 = arith.constant 0 : i32
      %c5_i32_185 = arith.constant 5 : i32
      %c0_i32_186 = arith.constant 0 : i32
      %c0_i32_187 = arith.constant 0 : i32
      %194 = tpu.memref_slice %arg2[%193, %c0_i32_187] : memref<100x128xf32, #tpu.memory_space<any>> -> memref<1x128xf32, #tpu.memory_space<any>>
      %195 = tpu.memref_squeeze %194 : memref<1x128xf32, #tpu.memory_space<any>> -> memref<128xf32, #tpu.memory_space<any>>
      %c0_i32_188 = arith.constant 0 : i32
      %196 = tpu.memref_slice %arg5[%9, %c5_i32_183, %c0_i32_184, %c0_i32_188] : memref<2x8x2x128xf32, #tpu.memory_space<vmem>> -> memref<1x1x1x128xf32, #tpu.memory_space<vmem>>
      %197 = tpu.memref_squeeze %196 : memref<1x1x1x128xf32, #tpu.memory_space<vmem>> -> memref<128xf32, #tpu.memory_space<vmem>>
      %198 = tpu.memref_slice %arg6[%9, %c5_i32_185, %c0_i32_186] : memref<2x8x2x!tpu.dma_semaphore, #tpu.memory_space<semaphore_mem>> -> memref<1x1x1x!tpu.dma_semaphore, #tpu.memory_space<semaphore_mem>>
      %199 = tpu.memref_squeeze %198 : memref<1x1x1x!tpu.dma_semaphore, #tpu.memory_space<semaphore_mem>> -> memref<!tpu.dma_semaphore, #tpu.memory_space<semaphore_mem>>
      tpu.enqueue_dma source(%195 : memref<128xf32, #tpu.memory_space<any>>) target(%197 : memref<128xf32, #tpu.memory_space<vmem>>) target_semaphore(%199 : memref<!tpu.dma_semaphore, #tpu.memory_space<semaphore_mem>>)
      %c11 = arith.constant 11 : index
      %200 = memref.load %arg1[%c11] : memref<32xi32, #tpu.memory_space<smem>>
      %c5_i32_189 = arith.constant 5 : i32
      %c1_i32_190 = arith.constant 1 : i32
      %c5_i32_191 = arith.constant 5 : i32
      %c1_i32_192 = arith.constant 1 : i32
      %c0_i32_193 = arith.constant 0 : i32
      %201 = tpu.memref_slice %arg2[%200, %c0_i32_193] : memref<100x128xf32, #tpu.memory_space<any>> -> memref<1x128xf32, #tpu.memory_space<any>>
      %202 = tpu.memref_squeeze %201 : memref<1x128xf32, #tpu.memory_space<any>> -> memref<128xf32, #tpu.memory_space<any>>
      %c0_i32_194 = arith.constant 0 : i32
      %203 = tpu.memref_slice %arg5[%9, %c5_i32_189, %c1_i32_190, %c0_i32_194] : memref<2x8x2x128xf32, #tpu.memory_space<vmem>> -> memref<1x1x1x128xf32, #tpu.memory_space<vmem>>
      %204 = tpu.memref_squeeze %203 : memref<1x1x1x128xf32, #tpu.memory_space<vmem>> -> memref<128xf32, #tpu.memory_space<vmem>>
      %205 = tpu.memref_slice %arg6[%9, %c5_i32_191, %c1_i32_192] : memref<2x8x2x!tpu.dma_semaphore, #tpu.memory_space<semaphore_mem>> -> memref<1x1x1x!tpu.dma_semaphore, #tpu.memory_space<semaphore_mem>>
      %206 = tpu.memref_squeeze %205 : memref<1x1x1x!tpu.dma_semaphore, #tpu.memory_space<semaphore_mem>> -> memref<!tpu.dma_semaphore, #tpu.memory_space<semaphore_mem>>
      tpu.enqueue_dma source(%202 : memref<128xf32, #tpu.memory_space<any>>) target(%204 : memref<128xf32, #tpu.memory_space<vmem>>) target_semaphore(%206 : memref<!tpu.dma_semaphore, #tpu.memory_space<semaphore_mem>>)
      %c12 = arith.constant 12 : index
      %207 = memref.load %arg1[%c12] : memref<32xi32, #tpu.memory_space<smem>>
      %c6_i32_195 = arith.constant 6 : i32
      %c0_i32_196 = arith.constant 0 : i32
      %c6_i32_197 = arith.constant 6 : i32
      %c0_i32_198 = arith.constant 0 : i32
      %c0_i32_199 = arith.constant 0 : i32
      %208 = tpu.memref_slice %arg2[%207, %c0_i32_199] : memref<100x128xf32, #tpu.memory_space<any>> -> memref<1x128xf32, #tpu.memory_space<any>>
      %209 = tpu.memref_squeeze %208 : memref<1x128xf32, #tpu.memory_space<any>> -> memref<128xf32, #tpu.memory_space<any>>
      %c0_i32_200 = arith.constant 0 : i32
      %210 = tpu.memref_slice %arg5[%9, %c6_i32_195, %c0_i32_196, %c0_i32_200] : memref<2x8x2x128xf32, #tpu.memory_space<vmem>> -> memref<1x1x1x128xf32, #tpu.memory_space<vmem>>
      %211 = tpu.memref_squeeze %210 : memref<1x1x1x128xf32, #tpu.memory_space<vmem>> -> memref<128xf32, #tpu.memory_space<vmem>>
      %212 = tpu.memref_slice %arg6[%9, %c6_i32_197, %c0_i32_198] : memref<2x8x2x!tpu.dma_semaphore, #tpu.memory_space<semaphore_mem>> -> memref<1x1x1x!tpu.dma_semaphore, #tpu.memory_space<semaphore_mem>>
      %213 = tpu.memref_squeeze %212 : memref<1x1x1x!tpu.dma_semaphore, #tpu.memory_space<semaphore_mem>> -> memref<!tpu.dma_semaphore, #tpu.memory_space<semaphore_mem>>
      tpu.enqueue_dma source(%209 : memref<128xf32, #tpu.memory_space<any>>) target(%211 : memref<128xf32, #tpu.memory_space<vmem>>) target_semaphore(%213 : memref<!tpu.dma_semaphore, #tpu.memory_space<semaphore_mem>>)
      %c13 = arith.constant 13 : index
      %214 = memref.load %arg1[%c13] : memref<32xi32, #tpu.memory_space<smem>>
      %c6_i32_201 = arith.constant 6 : i32
      %c1_i32_202 = arith.constant 1 : i32
      %c6_i32_203 = arith.constant 6 : i32
      %c1_i32_204 = arith.constant 1 : i32
      %c0_i32_205 = arith.constant 0 : i32
      %215 = tpu.memref_slice %arg2[%214, %c0_i32_205] : memref<100x128xf32, #tpu.memory_space<any>> -> memref<1x128xf32, #tpu.memory_space<any>>
      %216 = tpu.memref_squeeze %215 : memref<1x128xf32, #tpu.memory_space<any>> -> memref<128xf32, #tpu.memory_space<any>>
      %c0_i32_206 = arith.constant 0 : i32
      %217 = tpu.memref_slice %arg5[%9, %c6_i32_201, %c1_i32_202, %c0_i32_206] : memref<2x8x2x128xf32, #tpu.memory_space<vmem>> -> memref<1x1x1x128xf32, #tpu.memory_space<vmem>>
      %218 = tpu.memref_squeeze %217 : memref<1x1x1x128xf32, #tpu.memory_space<vmem>> -> memref<128xf32, #tpu.memory_space<vmem>>
      %219 = tpu.memref_slice %arg6[%9, %c6_i32_203, %c1_i32_204] : memref<2x8x2x!tpu.dma_semaphore, #tpu.memory_space<semaphore_mem>> -> memref<1x1x1x!tpu.dma_semaphore, #tpu.memory_space<semaphore_mem>>
      %220 = tpu.memref_squeeze %219 : memref<1x1x1x!tpu.dma_semaphore, #tpu.memory_space<semaphore_mem>> -> memref<!tpu.dma_semaphore, #tpu.memory_space<semaphore_mem>>
      tpu.enqueue_dma source(%216 : memref<128xf32, #tpu.memory_space<any>>) target(%218 : memref<128xf32, #tpu.memory_space<vmem>>) target_semaphore(%220 : memref<!tpu.dma_semaphore, #tpu.memory_space<semaphore_mem>>)
      %c14 = arith.constant 14 : index
      %221 = memref.load %arg1[%c14] : memref<32xi32, #tpu.memory_space<smem>>
      %c7_i32_207 = arith.constant 7 : i32
      %c0_i32_208 = arith.constant 0 : i32
      %c7_i32_209 = arith.constant 7 : i32
      %c0_i32_210 = arith.constant 0 : i32
      %c0_i32_211 = arith.constant 0 : i32
      %222 = tpu.memref_slice %arg2[%221, %c0_i32_211] : memref<100x128xf32, #tpu.memory_space<any>> -> memref<1x128xf32, #tpu.memory_space<any>>
      %223 = tpu.memref_squeeze %222 : memref<1x128xf32, #tpu.memory_space<any>> -> memref<128xf32, #tpu.memory_space<any>>
      %c0_i32_212 = arith.constant 0 : i32
      %224 = tpu.memref_slice %arg5[%9, %c7_i32_207, %c0_i32_208, %c0_i32_212] : memref<2x8x2x128xf32, #tpu.memory_space<vmem>> -> memref<1x1x1x128xf32, #tpu.memory_space<vmem>>
      %225 = tpu.memref_squeeze %224 : memref<1x1x1x128xf32, #tpu.memory_space<vmem>> -> memref<128xf32, #tpu.memory_space<vmem>>
      %226 = tpu.memref_slice %arg6[%9, %c7_i32_209, %c0_i32_210] : memref<2x8x2x!tpu.dma_semaphore, #tpu.memory_space<semaphore_mem>> -> memref<1x1x1x!tpu.dma_semaphore, #tpu.memory_space<semaphore_mem>>
      %227 = tpu.memref_squeeze %226 : memref<1x1x1x!tpu.dma_semaphore, #tpu.memory_space<semaphore_mem>> -> memref<!tpu.dma_semaphore, #tpu.memory_space<semaphore_mem>>
      tpu.enqueue_dma source(%223 : memref<128xf32, #tpu.memory_space<any>>) target(%225 : memref<128xf32, #tpu.memory_space<vmem>>) target_semaphore(%227 : memref<!tpu.dma_semaphore, #tpu.memory_space<semaphore_mem>>)
      %c15 = arith.constant 15 : index
      %228 = memref.load %arg1[%c15] : memref<32xi32, #tpu.memory_space<smem>>
      %c7_i32_213 = arith.constant 7 : i32
      %c1_i32_214 = arith.constant 1 : i32
      %c7_i32_215 = arith.constant 7 : i32
      %c1_i32_216 = arith.constant 1 : i32
      %c0_i32_217 = arith.constant 0 : i32
      %229 = tpu.memref_slice %arg2[%228, %c0_i32_217] : memref<100x128xf32, #tpu.memory_space<any>> -> memref<1x128xf32, #tpu.memory_space<any>>
      %230 = tpu.memref_squeeze %229 : memref<1x128xf32, #tpu.memory_space<any>> -> memref<128xf32, #tpu.memory_space<any>>
      %c0_i32_218 = arith.constant 0 : i32
      %231 = tpu.memref_slice %arg5[%9, %c7_i32_213, %c1_i32_214, %c0_i32_218] : memref<2x8x2x128xf32, #tpu.memory_space<vmem>> -> memref<1x1x1x128xf32, #tpu.memory_space<vmem>>
      %232 = tpu.memref_squeeze %231 : memref<1x1x1x128xf32, #tpu.memory_space<vmem>> -> memref<128xf32, #tpu.memory_space<vmem>>
      %233 = tpu.memref_slice %arg6[%9, %c7_i32_215, %c1_i32_216] : memref<2x8x2x!tpu.dma_semaphore, #tpu.memory_space<semaphore_mem>> -> memref<1x1x1x!tpu.dma_semaphore, #tpu.memory_space<semaphore_mem>>
      %234 = tpu.memref_squeeze %233 : memref<1x1x1x!tpu.dma_semaphore, #tpu.memory_space<semaphore_mem>> -> memref<!tpu.dma_semaphore, #tpu.memory_space<semaphore_mem>>
      tpu.enqueue_dma source(%230 : memref<128xf32, #tpu.memory_space<any>>) target(%232 : memref<128xf32, #tpu.memory_space<vmem>>) target_semaphore(%234 : memref<!tpu.dma_semaphore, #tpu.memory_space<semaphore_mem>>)
    } else {
    }
    %c1_i32_5 = arith.constant 1 : i32
    %13 = arith.addi %arg0, %c1_i32_5 : i32
    %c2_i32_6 = arith.constant 2 : i32
    %14 = arith.cmpi slt, %13, %c2_i32_6 : i32
    %15 = arith.extui %14 : i1 to i32
    %c0_i32_7 = arith.constant 0 : i32
    %16 = arith.cmpi ne, %15, %c0_i32_7 : i32
    scf.if %16 {
      %c1_i32_122 = arith.constant 1 : i32
      %123 = arith.addi %arg0, %c1_i32_122 : i32
      %c1_i32_123 = arith.constant 1 : i32
      %124 = arith.subi %c1_i32_123, %9 : i32
      %c16_i32 = arith.constant 16 : i32
      %125 = arith.muli %123, %c16_i32 : i32
      %c0_i32_124 = arith.constant 0 : i32
      %126 = arith.addi %125, %c0_i32_124 : i32
      %c0_i32_125 = arith.constant 0 : i32
      %127 = arith.addi %126, %c0_i32_125 : i32
      %128 = arith.index_cast %127 : i32 to index
      %129 = memref.load %arg1[%128] : memref<32xi32, #tpu.memory_space<smem>>
      %c0_i32_126 = arith.constant 0 : i32
      %c0_i32_127 = arith.constant 0 : i32
      %c0_i32_128 = arith.constant 0 : i32
      %c0_i32_129 = arith.constant 0 : i32
      %c0_i32_130 = arith.constant 0 : i32
      %130 = tpu.memref_slice %arg2[%129, %c0_i32_130] : memref<100x128xf32, #tpu.memory_space<any>> -> memref<1x128xf32, #tpu.memory_space<any>>
      %131 = tpu.memref_squeeze %130 : memref<1x128xf32, #tpu.memory_space<any>> -> memref<128xf32, #tpu.memory_space<any>>
      %c0_i32_131 = arith.constant 0 : i32
      %132 = tpu.memref_slice %arg5[%124, %c0_i32_126, %c0_i32_127, %c0_i32_131] : memref<2x8x2x128xf32, #tpu.memory_space<vmem>> -> memref<1x1x1x128xf32, #tpu.memory_space<vmem>>
      %133 = tpu.memref_squeeze %132 : memref<1x1x1x128xf32, #tpu.memory_space<vmem>> -> memref<128xf32, #tpu.memory_space<vmem>>
      %134 = tpu.memref_slice %arg6[%124, %c0_i32_128, %c0_i32_129] : memref<2x8x2x!tpu.dma_semaphore, #tpu.memory_space<semaphore_mem>> -> memref<1x1x1x!tpu.dma_semaphore, #tpu.memory_space<semaphore_mem>>
      %135 = tpu.memref_squeeze %134 : memref<1x1x1x!tpu.dma_semaphore, #tpu.memory_space<semaphore_mem>> -> memref<!tpu.dma_semaphore, #tpu.memory_space<semaphore_mem>>
      tpu.enqueue_dma source(%131 : memref<128xf32, #tpu.memory_space<any>>) target(%133 : memref<128xf32, #tpu.memory_space<vmem>>) target_semaphore(%135 : memref<!tpu.dma_semaphore, #tpu.memory_space<semaphore_mem>>)
      %c0_i32_132 = arith.constant 0 : i32
      %136 = arith.addi %125, %c0_i32_132 : i32
      %c1_i32_133 = arith.constant 1 : i32
      %137 = arith.addi %136, %c1_i32_133 : i32
      %138 = arith.index_cast %137 : i32 to index
      %139 = memref.load %arg1[%138] : memref<32xi32, #tpu.memory_space<smem>>
      %c0_i32_134 = arith.constant 0 : i32
      %c1_i32_135 = arith.constant 1 : i32
      %c0_i32_136 = arith.constant 0 : i32
      %c1_i32_137 = arith.constant 1 : i32
      %c0_i32_138 = arith.constant 0 : i32
      %140 = tpu.memref_slice %arg2[%139, %c0_i32_138] : memref<100x128xf32, #tpu.memory_space<any>> -> memref<1x128xf32, #tpu.memory_space<any>>
      %141 = tpu.memref_squeeze %140 : memref<1x128xf32, #tpu.memory_space<any>> -> memref<128xf32, #tpu.memory_space<any>>
      %c0_i32_139 = arith.constant 0 : i32
      %142 = tpu.memref_slice %arg5[%124, %c0_i32_134, %c1_i32_135, %c0_i32_139] : memref<2x8x2x128xf32, #tpu.memory_space<vmem>> -> memref<1x1x1x128xf32, #tpu.memory_space<vmem>>
      %143 = tpu.memref_squeeze %142 : memref<1x1x1x128xf32, #tpu.memory_space<vmem>> -> memref<128xf32, #tpu.memory_space<vmem>>
      %144 = tpu.memref_slice %arg6[%124, %c0_i32_136, %c1_i32_137] : memref<2x8x2x!tpu.dma_semaphore, #tpu.memory_space<semaphore_mem>> -> memref<1x1x1x!tpu.dma_semaphore, #tpu.memory_space<semaphore_mem>>
      %145 = tpu.memref_squeeze %144 : memref<1x1x1x!tpu.dma_semaphore, #tpu.memory_space<semaphore_mem>> -> memref<!tpu.dma_semaphore, #tpu.memory_space<semaphore_mem>>
      tpu.enqueue_dma source(%141 : memref<128xf32, #tpu.memory_space<any>>) target(%143 : memref<128xf32, #tpu.memory_space<vmem>>) target_semaphore(%145 : memref<!tpu.dma_semaphore, #tpu.memory_space<semaphore_mem>>)
      %c2_i32_140 = arith.constant 2 : i32
      %146 = arith.addi %125, %c2_i32_140 : i32
      %c0_i32_141 = arith.constant 0 : i32
      %147 = arith.addi %146, %c0_i32_141 : i32
      %148 = arith.index_cast %147 : i32 to index
      %149 = memref.load %arg1[%148] : memref<32xi32, #tpu.memory_space<smem>>
      %c1_i32_142 = arith.constant 1 : i32
      %c0_i32_143 = arith.constant 0 : i32
      %c1_i32_144 = arith.constant 1 : i32
      %c0_i32_145 = arith.constant 0 : i32
      %c0_i32_146 = arith.constant 0 : i32
      %150 = tpu.memref_slice %arg2[%149, %c0_i32_146] : memref<100x128xf32, #tpu.memory_space<any>> -> memref<1x128xf32, #tpu.memory_space<any>>
      %151 = tpu.memref_squeeze %150 : memref<1x128xf32, #tpu.memory_space<any>> -> memref<128xf32, #tpu.memory_space<any>>
      %c0_i32_147 = arith.constant 0 : i32
      %152 = tpu.memref_slice %arg5[%124, %c1_i32_142, %c0_i32_143, %c0_i32_147] : memref<2x8x2x128xf32, #tpu.memory_space<vmem>> -> memref<1x1x1x128xf32, #tpu.memory_space<vmem>>
      %153 = tpu.memref_squeeze %152 : memref<1x1x1x128xf32, #tpu.memory_space<vmem>> -> memref<128xf32, #tpu.memory_space<vmem>>
      %154 = tpu.memref_slice %arg6[%124, %c1_i32_144, %c0_i32_145] : memref<2x8x2x!tpu.dma_semaphore, #tpu.memory_space<semaphore_mem>> -> memref<1x1x1x!tpu.dma_semaphore, #tpu.memory_space<semaphore_mem>>
      %155 = tpu.memref_squeeze %154 : memref<1x1x1x!tpu.dma_semaphore, #tpu.memory_space<semaphore_mem>> -> memref<!tpu.dma_semaphore, #tpu.memory_space<semaphore_mem>>
      tpu.enqueue_dma source(%151 : memref<128xf32, #tpu.memory_space<any>>) target(%153 : memref<128xf32, #tpu.memory_space<vmem>>) target_semaphore(%155 : memref<!tpu.dma_semaphore, #tpu.memory_space<semaphore_mem>>)
      %c2_i32_148 = arith.constant 2 : i32
      %156 = arith.addi %125, %c2_i32_148 : i32
      %c1_i32_149 = arith.constant 1 : i32
      %157 = arith.addi %156, %c1_i32_149 : i32
      %158 = arith.index_cast %157 : i32 to index
      %159 = memref.load %arg1[%158] : memref<32xi32, #tpu.memory_space<smem>>
      %c1_i32_150 = arith.constant 1 : i32
      %c1_i32_151 = arith.constant 1 : i32
      %c1_i32_152 = arith.constant 1 : i32
      %c1_i32_153 = arith.constant 1 : i32
      %c0_i32_154 = arith.constant 0 : i32
      %160 = tpu.memref_slice %arg2[%159, %c0_i32_154] : memref<100x128xf32, #tpu.memory_space<any>> -> memref<1x128xf32, #tpu.memory_space<any>>
      %161 = tpu.memref_squeeze %160 : memref<1x128xf32, #tpu.memory_space<any>> -> memref<128xf32, #tpu.memory_space<any>>
      %c0_i32_155 = arith.constant 0 : i32
      %162 = tpu.memref_slice %arg5[%124, %c1_i32_150, %c1_i32_151, %c0_i32_155] : memref<2x8x2x128xf32, #tpu.memory_space<vmem>> -> memref<1x1x1x128xf32, #tpu.memory_space<vmem>>
      %163 = tpu.memref_squeeze %162 : memref<1x1x1x128xf32, #tpu.memory_space<vmem>> -> memref<128xf32, #tpu.memory_space<vmem>>
      %164 = tpu.memref_slice %arg6[%124, %c1_i32_152, %c1_i32_153] : memref<2x8x2x!tpu.dma_semaphore, #tpu.memory_space<semaphore_mem>> -> memref<1x1x1x!tpu.dma_semaphore, #tpu.memory_space<semaphore_mem>>
      %165 = tpu.memref_squeeze %164 : memref<1x1x1x!tpu.dma_semaphore, #tpu.memory_space<semaphore_mem>> -> memref<!tpu.dma_semaphore, #tpu.memory_space<semaphore_mem>>
      tpu.enqueue_dma source(%161 : memref<128xf32, #tpu.memory_space<any>>) target(%163 : memref<128xf32, #tpu.memory_space<vmem>>) target_semaphore(%165 : memref<!tpu.dma_semaphore, #tpu.memory_space<semaphore_mem>>)
      %c4_i32_156 = arith.constant 4 : i32
      %166 = arith.addi %125, %c4_i32_156 : i32
      %c0_i32_157 = arith.constant 0 : i32
      %167 = arith.addi %166, %c0_i32_157 : i32
      %168 = arith.index_cast %167 : i32 to index
      %169 = memref.load %arg1[%168] : memref<32xi32, #tpu.memory_space<smem>>
      %c2_i32_158 = arith.constant 2 : i32
      %c0_i32_159 = arith.constant 0 : i32
      %c2_i32_160 = arith.constant 2 : i32
      %c0_i32_161 = arith.constant 0 : i32
      %c0_i32_162 = arith.constant 0 : i32
      %170 = tpu.memref_slice %arg2[%169, %c0_i32_162] : memref<100x128xf32, #tpu.memory_space<any>> -> memref<1x128xf32, #tpu.memory_space<any>>
      %171 = tpu.memref_squeeze %170 : memref<1x128xf32, #tpu.memory_space<any>> -> memref<128xf32, #tpu.memory_space<any>>
      %c0_i32_163 = arith.constant 0 : i32
      %172 = tpu.memref_slice %arg5[%124, %c2_i32_158, %c0_i32_159, %c0_i32_163] : memref<2x8x2x128xf32, #tpu.memory_space<vmem>> -> memref<1x1x1x128xf32, #tpu.memory_space<vmem>>
      %173 = tpu.memref_squeeze %172 : memref<1x1x1x128xf32, #tpu.memory_space<vmem>> -> memref<128xf32, #tpu.memory_space<vmem>>
      %174 = tpu.memref_slice %arg6[%124, %c2_i32_160, %c0_i32_161] : memref<2x8x2x!tpu.dma_semaphore, #tpu.memory_space<semaphore_mem>> -> memref<1x1x1x!tpu.dma_semaphore, #tpu.memory_space<semaphore_mem>>
      %175 = tpu.memref_squeeze %174 : memref<1x1x1x!tpu.dma_semaphore, #tpu.memory_space<semaphore_mem>> -> memref<!tpu.dma_semaphore, #tpu.memory_space<semaphore_mem>>
      tpu.enqueue_dma source(%171 : memref<128xf32, #tpu.memory_space<any>>) target(%173 : memref<128xf32, #tpu.memory_space<vmem>>) target_semaphore(%175 : memref<!tpu.dma_semaphore, #tpu.memory_space<semaphore_mem>>)
      %c4_i32_164 = arith.constant 4 : i32
      %176 = arith.addi %125, %c4_i32_164 : i32
      %c1_i32_165 = arith.constant 1 : i32
      %177 = arith.addi %176, %c1_i32_165 : i32
      %178 = arith.index_cast %177 : i32 to index
      %179 = memref.load %arg1[%178] : memref<32xi32, #tpu.memory_space<smem>>
      %c2_i32_166 = arith.constant 2 : i32
      %c1_i32_167 = arith.constant 1 : i32
      %c2_i32_168 = arith.constant 2 : i32
      %c1_i32_169 = arith.constant 1 : i32
      %c0_i32_170 = arith.constant 0 : i32
      %180 = tpu.memref_slice %arg2[%179, %c0_i32_170] : memref<100x128xf32, #tpu.memory_space<any>> -> memref<1x128xf32, #tpu.memory_space<any>>
      %181 = tpu.memref_squeeze %180 : memref<1x128xf32, #tpu.memory_space<any>> -> memref<128xf32, #tpu.memory_space<any>>
      %c0_i32_171 = arith.constant 0 : i32
      %182 = tpu.memref_slice %arg5[%124, %c2_i32_166, %c1_i32_167, %c0_i32_171] : memref<2x8x2x128xf32, #tpu.memory_space<vmem>> -> memref<1x1x1x128xf32, #tpu.memory_space<vmem>>
      %183 = tpu.memref_squeeze %182 : memref<1x1x1x128xf32, #tpu.memory_space<vmem>> -> memref<128xf32, #tpu.memory_space<vmem>>
      %184 = tpu.memref_slice %arg6[%124, %c2_i32_168, %c1_i32_169] : memref<2x8x2x!tpu.dma_semaphore, #tpu.memory_space<semaphore_mem>> -> memref<1x1x1x!tpu.dma_semaphore, #tpu.memory_space<semaphore_mem>>
      %185 = tpu.memref_squeeze %184 : memref<1x1x1x!tpu.dma_semaphore, #tpu.memory_space<semaphore_mem>> -> memref<!tpu.dma_semaphore, #tpu.memory_space<semaphore_mem>>
      tpu.enqueue_dma source(%181 : memref<128xf32, #tpu.memory_space<any>>) target(%183 : memref<128xf32, #tpu.memory_space<vmem>>) target_semaphore(%185 : memref<!tpu.dma_semaphore, #tpu.memory_space<semaphore_mem>>)
      %c6_i32_172 = arith.constant 6 : i32
      %186 = arith.addi %125, %c6_i32_172 : i32
      %c0_i32_173 = arith.constant 0 : i32
      %187 = arith.addi %186, %c0_i32_173 : i32
      %188 = arith.index_cast %187 : i32 to index
      %189 = memref.load %arg1[%188] : memref<32xi32, #tpu.memory_space<smem>>
      %c3_i32_174 = arith.constant 3 : i32
      %c0_i32_175 = arith.constant 0 : i32
      %c3_i32_176 = arith.constant 3 : i32
      %c0_i32_177 = arith.constant 0 : i32
      %c0_i32_178 = arith.constant 0 : i32
      %190 = tpu.memref_slice %arg2[%189, %c0_i32_178] : memref<100x128xf32, #tpu.memory_space<any>> -> memref<1x128xf32, #tpu.memory_space<any>>
      %191 = tpu.memref_squeeze %190 : memref<1x128xf32, #tpu.memory_space<any>> -> memref<128xf32, #tpu.memory_space<any>>
      %c0_i32_179 = arith.constant 0 : i32
      %192 = tpu.memref_slice %arg5[%124, %c3_i32_174, %c0_i32_175, %c0_i32_179] : memref<2x8x2x128xf32, #tpu.memory_space<vmem>> -> memref<1x1x1x128xf32, #tpu.memory_space<vmem>>
      %193 = tpu.memref_squeeze %192 : memref<1x1x1x128xf32, #tpu.memory_space<vmem>> -> memref<128xf32, #tpu.memory_space<vmem>>
      %194 = tpu.memref_slice %arg6[%124, %c3_i32_176, %c0_i32_177] : memref<2x8x2x!tpu.dma_semaphore, #tpu.memory_space<semaphore_mem>> -> memref<1x1x1x!tpu.dma_semaphore, #tpu.memory_space<semaphore_mem>>
      %195 = tpu.memref_squeeze %194 : memref<1x1x1x!tpu.dma_semaphore, #tpu.memory_space<semaphore_mem>> -> memref<!tpu.dma_semaphore, #tpu.memory_space<semaphore_mem>>
      tpu.enqueue_dma source(%191 : memref<128xf32, #tpu.memory_space<any>>) target(%193 : memref<128xf32, #tpu.memory_space<vmem>>) target_semaphore(%195 : memref<!tpu.dma_semaphore, #tpu.memory_space<semaphore_mem>>)
      %c6_i32_180 = arith.constant 6 : i32
      %196 = arith.addi %125, %c6_i32_180 : i32
      %c1_i32_181 = arith.constant 1 : i32
      %197 = arith.addi %196, %c1_i32_181 : i32
      %198 = arith.index_cast %197 : i32 to index
      %199 = memref.load %arg1[%198] : memref<32xi32, #tpu.memory_space<smem>>
      %c3_i32_182 = arith.constant 3 : i32
      %c1_i32_183 = arith.constant 1 : i32
      %c3_i32_184 = arith.constant 3 : i32
      %c1_i32_185 = arith.constant 1 : i32
      %c0_i32_186 = arith.constant 0 : i32
      %200 = tpu.memref_slice %arg2[%199, %c0_i32_186] : memref<100x128xf32, #tpu.memory_space<any>> -> memref<1x128xf32, #tpu.memory_space<any>>
      %201 = tpu.memref_squeeze %200 : memref<1x128xf32, #tpu.memory_space<any>> -> memref<128xf32, #tpu.memory_space<any>>
      %c0_i32_187 = arith.constant 0 : i32
      %202 = tpu.memref_slice %arg5[%124, %c3_i32_182, %c1_i32_183, %c0_i32_187] : memref<2x8x2x128xf32, #tpu.memory_space<vmem>> -> memref<1x1x1x128xf32, #tpu.memory_space<vmem>>
      %203 = tpu.memref_squeeze %202 : memref<1x1x1x128xf32, #tpu.memory_space<vmem>> -> memref<128xf32, #tpu.memory_space<vmem>>
      %204 = tpu.memref_slice %arg6[%124, %c3_i32_184, %c1_i32_185] : memref<2x8x2x!tpu.dma_semaphore, #tpu.memory_space<semaphore_mem>> -> memref<1x1x1x!tpu.dma_semaphore, #tpu.memory_space<semaphore_mem>>
      %205 = tpu.memref_squeeze %204 : memref<1x1x1x!tpu.dma_semaphore, #tpu.memory_space<semaphore_mem>> -> memref<!tpu.dma_semaphore, #tpu.memory_space<semaphore_mem>>
      tpu.enqueue_dma source(%201 : memref<128xf32, #tpu.memory_space<any>>) target(%203 : memref<128xf32, #tpu.memory_space<vmem>>) target_semaphore(%205 : memref<!tpu.dma_semaphore, #tpu.memory_space<semaphore_mem>>)
      %c8_i32 = arith.constant 8 : i32
      %206 = arith.addi %125, %c8_i32 : i32
      %c0_i32_188 = arith.constant 0 : i32
      %207 = arith.addi %206, %c0_i32_188 : i32
      %208 = arith.index_cast %207 : i32 to index
      %209 = memref.load %arg1[%208] : memref<32xi32, #tpu.memory_space<smem>>
      %c4_i32_189 = arith.constant 4 : i32
      %c0_i32_190 = arith.constant 0 : i32
      %c4_i32_191 = arith.constant 4 : i32
      %c0_i32_192 = arith.constant 0 : i32
      %c0_i32_193 = arith.constant 0 : i32
      %210 = tpu.memref_slice %arg2[%209, %c0_i32_193] : memref<100x128xf32, #tpu.memory_space<any>> -> memref<1x128xf32, #tpu.memory_space<any>>
      %211 = tpu.memref_squeeze %210 : memref<1x128xf32, #tpu.memory_space<any>> -> memref<128xf32, #tpu.memory_space<any>>
      %c0_i32_194 = arith.constant 0 : i32
      %212 = tpu.memref_slice %arg5[%124, %c4_i32_189, %c0_i32_190, %c0_i32_194] : memref<2x8x2x128xf32, #tpu.memory_space<vmem>> -> memref<1x1x1x128xf32, #tpu.memory_space<vmem>>
      %213 = tpu.memref_squeeze %212 : memref<1x1x1x128xf32, #tpu.memory_space<vmem>> -> memref<128xf32, #tpu.memory_space<vmem>>
      %214 = tpu.memref_slice %arg6[%124, %c4_i32_191, %c0_i32_192] : memref<2x8x2x!tpu.dma_semaphore, #tpu.memory_space<semaphore_mem>> -> memref<1x1x1x!tpu.dma_semaphore, #tpu.memory_space<semaphore_mem>>
      %215 = tpu.memref_squeeze %214 : memref<1x1x1x!tpu.dma_semaphore, #tpu.memory_space<semaphore_mem>> -> memref<!tpu.dma_semaphore, #tpu.memory_space<semaphore_mem>>
      tpu.enqueue_dma source(%211 : memref<128xf32, #tpu.memory_space<any>>) target(%213 : memref<128xf32, #tpu.memory_space<vmem>>) target_semaphore(%215 : memref<!tpu.dma_semaphore, #tpu.memory_space<semaphore_mem>>)
      %c8_i32_195 = arith.constant 8 : i32
      %216 = arith.addi %125, %c8_i32_195 : i32
      %c1_i32_196 = arith.constant 1 : i32
      %217 = arith.addi %216, %c1_i32_196 : i32
      %218 = arith.index_cast %217 : i32 to index
      %219 = memref.load %arg1[%218] : memref<32xi32, #tpu.memory_space<smem>>
      %c4_i32_197 = arith.constant 4 : i32
      %c1_i32_198 = arith.constant 1 : i32
      %c4_i32_199 = arith.constant 4 : i32
      %c1_i32_200 = arith.constant 1 : i32
      %c0_i32_201 = arith.constant 0 : i32
      %220 = tpu.memref_slice %arg2[%219, %c0_i32_201] : memref<100x128xf32, #tpu.memory_space<any>> -> memref<1x128xf32, #tpu.memory_space<any>>
      %221 = tpu.memref_squeeze %220 : memref<1x128xf32, #tpu.memory_space<any>> -> memref<128xf32, #tpu.memory_space<any>>
      %c0_i32_202 = arith.constant 0 : i32
      %222 = tpu.memref_slice %arg5[%124, %c4_i32_197, %c1_i32_198, %c0_i32_202] : memref<2x8x2x128xf32, #tpu.memory_space<vmem>> -> memref<1x1x1x128xf32, #tpu.memory_space<vmem>>
      %223 = tpu.memref_squeeze %222 : memref<1x1x1x128xf32, #tpu.memory_space<vmem>> -> memref<128xf32, #tpu.memory_space<vmem>>
      %224 = tpu.memref_slice %arg6[%124, %c4_i32_199, %c1_i32_200] : memref<2x8x2x!tpu.dma_semaphore, #tpu.memory_space<semaphore_mem>> -> memref<1x1x1x!tpu.dma_semaphore, #tpu.memory_space<semaphore_mem>>
      %225 = tpu.memref_squeeze %224 : memref<1x1x1x!tpu.dma_semaphore, #tpu.memory_space<semaphore_mem>> -> memref<!tpu.dma_semaphore, #tpu.memory_space<semaphore_mem>>
      tpu.enqueue_dma source(%221 : memref<128xf32, #tpu.memory_space<any>>) target(%223 : memref<128xf32, #tpu.memory_space<vmem>>) target_semaphore(%225 : memref<!tpu.dma_semaphore, #tpu.memory_space<semaphore_mem>>)
      %c10_i32 = arith.constant 10 : i32
      %226 = arith.addi %125, %c10_i32 : i32
      %c0_i32_203 = arith.constant 0 : i32
      %227 = arith.addi %226, %c0_i32_203 : i32
      %228 = arith.index_cast %227 : i32 to index
      %229 = memref.load %arg1[%228] : memref<32xi32, #tpu.memory_space<smem>>
      %c5_i32_204 = arith.constant 5 : i32
      %c0_i32_205 = arith.constant 0 : i32
      %c5_i32_206 = arith.constant 5 : i32
      %c0_i32_207 = arith.constant 0 : i32
      %c0_i32_208 = arith.constant 0 : i32
      %230 = tpu.memref_slice %arg2[%229, %c0_i32_208] : memref<100x128xf32, #tpu.memory_space<any>> -> memref<1x128xf32, #tpu.memory_space<any>>
      %231 = tpu.memref_squeeze %230 : memref<1x128xf32, #tpu.memory_space<any>> -> memref<128xf32, #tpu.memory_space<any>>
      %c0_i32_209 = arith.constant 0 : i32
      %232 = tpu.memref_slice %arg5[%124, %c5_i32_204, %c0_i32_205, %c0_i32_209] : memref<2x8x2x128xf32, #tpu.memory_space<vmem>> -> memref<1x1x1x128xf32, #tpu.memory_space<vmem>>
      %233 = tpu.memref_squeeze %232 : memref<1x1x1x128xf32, #tpu.memory_space<vmem>> -> memref<128xf32, #tpu.memory_space<vmem>>
      %234 = tpu.memref_slice %arg6[%124, %c5_i32_206, %c0_i32_207] : memref<2x8x2x!tpu.dma_semaphore, #tpu.memory_space<semaphore_mem>> -> memref<1x1x1x!tpu.dma_semaphore, #tpu.memory_space<semaphore_mem>>
      %235 = tpu.memref_squeeze %234 : memref<1x1x1x!tpu.dma_semaphore, #tpu.memory_space<semaphore_mem>> -> memref<!tpu.dma_semaphore, #tpu.memory_space<semaphore_mem>>
      tpu.enqueue_dma source(%231 : memref<128xf32, #tpu.memory_space<any>>) target(%233 : memref<128xf32, #tpu.memory_space<vmem>>) target_semaphore(%235 : memref<!tpu.dma_semaphore, #tpu.memory_space<semaphore_mem>>)
      %c10_i32_210 = arith.constant 10 : i32
      %236 = arith.addi %125, %c10_i32_210 : i32
      %c1_i32_211 = arith.constant 1 : i32
      %237 = arith.addi %236, %c1_i32_211 : i32
      %238 = arith.index_cast %237 : i32 to index
      %239 = memref.load %arg1[%238] : memref<32xi32, #tpu.memory_space<smem>>
      %c5_i32_212 = arith.constant 5 : i32
      %c1_i32_213 = arith.constant 1 : i32
      %c5_i32_214 = arith.constant 5 : i32
      %c1_i32_215 = arith.constant 1 : i32
      %c0_i32_216 = arith.constant 0 : i32
      %240 = tpu.memref_slice %arg2[%239, %c0_i32_216] : memref<100x128xf32, #tpu.memory_space<any>> -> memref<1x128xf32, #tpu.memory_space<any>>
      %241 = tpu.memref_squeeze %240 : memref<1x128xf32, #tpu.memory_space<any>> -> memref<128xf32, #tpu.memory_space<any>>
      %c0_i32_217 = arith.constant 0 : i32
      %242 = tpu.memref_slice %arg5[%124, %c5_i32_212, %c1_i32_213, %c0_i32_217] : memref<2x8x2x128xf32, #tpu.memory_space<vmem>> -> memref<1x1x1x128xf32, #tpu.memory_space<vmem>>
      %243 = tpu.memref_squeeze %242 : memref<1x1x1x128xf32, #tpu.memory_space<vmem>> -> memref<128xf32, #tpu.memory_space<vmem>>
      %244 = tpu.memref_slice %arg6[%124, %c5_i32_214, %c1_i32_215] : memref<2x8x2x!tpu.dma_semaphore, #tpu.memory_space<semaphore_mem>> -> memref<1x1x1x!tpu.dma_semaphore, #tpu.memory_space<semaphore_mem>>
      %245 = tpu.memref_squeeze %244 : memref<1x1x1x!tpu.dma_semaphore, #tpu.memory_space<semaphore_mem>> -> memref<!tpu.dma_semaphore, #tpu.memory_space<semaphore_mem>>
      tpu.enqueue_dma source(%241 : memref<128xf32, #tpu.memory_space<any>>) target(%243 : memref<128xf32, #tpu.memory_space<vmem>>) target_semaphore(%245 : memref<!tpu.dma_semaphore, #tpu.memory_space<semaphore_mem>>)
      %c12_i32 = arith.constant 12 : i32
      %246 = arith.addi %125, %c12_i32 : i32
      %c0_i32_218 = arith.constant 0 : i32
      %247 = arith.addi %246, %c0_i32_218 : i32
      %248 = arith.index_cast %247 : i32 to index
      %249 = memref.load %arg1[%248] : memref<32xi32, #tpu.memory_space<smem>>
      %c6_i32_219 = arith.constant 6 : i32
      %c0_i32_220 = arith.constant 0 : i32
      %c6_i32_221 = arith.constant 6 : i32
      %c0_i32_222 = arith.constant 0 : i32
      %c0_i32_223 = arith.constant 0 : i32
      %250 = tpu.memref_slice %arg2[%249, %c0_i32_223] : memref<100x128xf32, #tpu.memory_space<any>> -> memref<1x128xf32, #tpu.memory_space<any>>
      %251 = tpu.memref_squeeze %250 : memref<1x128xf32, #tpu.memory_space<any>> -> memref<128xf32, #tpu.memory_space<any>>
      %c0_i32_224 = arith.constant 0 : i32
      %252 = tpu.memref_slice %arg5[%124, %c6_i32_219, %c0_i32_220, %c0_i32_224] : memref<2x8x2x128xf32, #tpu.memory_space<vmem>> -> memref<1x1x1x128xf32, #tpu.memory_space<vmem>>
      %253 = tpu.memref_squeeze %252 : memref<1x1x1x128xf32, #tpu.memory_space<vmem>> -> memref<128xf32, #tpu.memory_space<vmem>>
      %254 = tpu.memref_slice %arg6[%124, %c6_i32_221, %c0_i32_222] : memref<2x8x2x!tpu.dma_semaphore, #tpu.memory_space<semaphore_mem>> -> memref<1x1x1x!tpu.dma_semaphore, #tpu.memory_space<semaphore_mem>>
      %255 = tpu.memref_squeeze %254 : memref<1x1x1x!tpu.dma_semaphore, #tpu.memory_space<semaphore_mem>> -> memref<!tpu.dma_semaphore, #tpu.memory_space<semaphore_mem>>
      tpu.enqueue_dma source(%251 : memref<128xf32, #tpu.memory_space<any>>) target(%253 : memref<128xf32, #tpu.memory_space<vmem>>) target_semaphore(%255 : memref<!tpu.dma_semaphore, #tpu.memory_space<semaphore_mem>>)
      %c12_i32_225 = arith.constant 12 : i32
      %256 = arith.addi %125, %c12_i32_225 : i32
      %c1_i32_226 = arith.constant 1 : i32
      %257 = arith.addi %256, %c1_i32_226 : i32
      %258 = arith.index_cast %257 : i32 to index
      %259 = memref.load %arg1[%258] : memref<32xi32, #tpu.memory_space<smem>>
      %c6_i32_227 = arith.constant 6 : i32
      %c1_i32_228 = arith.constant 1 : i32
      %c6_i32_229 = arith.constant 6 : i32
      %c1_i32_230 = arith.constant 1 : i32
      %c0_i32_231 = arith.constant 0 : i32
      %260 = tpu.memref_slice %arg2[%259, %c0_i32_231] : memref<100x128xf32, #tpu.memory_space<any>> -> memref<1x128xf32, #tpu.memory_space<any>>
      %261 = tpu.memref_squeeze %260 : memref<1x128xf32, #tpu.memory_space<any>> -> memref<128xf32, #tpu.memory_space<any>>
      %c0_i32_232 = arith.constant 0 : i32
      %262 = tpu.memref_slice %arg5[%124, %c6_i32_227, %c1_i32_228, %c0_i32_232] : memref<2x8x2x128xf32, #tpu.memory_space<vmem>> -> memref<1x1x1x128xf32, #tpu.memory_space<vmem>>
      %263 = tpu.memref_squeeze %262 : memref<1x1x1x128xf32, #tpu.memory_space<vmem>> -> memref<128xf32, #tpu.memory_space<vmem>>
      %264 = tpu.memref_slice %arg6[%124, %c6_i32_229, %c1_i32_230] : memref<2x8x2x!tpu.dma_semaphore, #tpu.memory_space<semaphore_mem>> -> memref<1x1x1x!tpu.dma_semaphore, #tpu.memory_space<semaphore_mem>>
      %265 = tpu.memref_squeeze %264 : memref<1x1x1x!tpu.dma_semaphore, #tpu.memory_space<semaphore_mem>> -> memref<!tpu.dma_semaphore, #tpu.memory_space<semaphore_mem>>
      tpu.enqueue_dma source(%261 : memref<128xf32, #tpu.memory_space<any>>) target(%263 : memref<128xf32, #tpu.memory_space<vmem>>) target_semaphore(%265 : memref<!tpu.dma_semaphore, #tpu.memory_space<semaphore_mem>>)
      %c14_i32 = arith.constant 14 : i32
      %266 = arith.addi %125, %c14_i32 : i32
      %c0_i32_233 = arith.constant 0 : i32
      %267 = arith.addi %266, %c0_i32_233 : i32
      %268 = arith.index_cast %267 : i32 to index
      %269 = memref.load %arg1[%268] : memref<32xi32, #tpu.memory_space<smem>>
      %c7_i32_234 = arith.constant 7 : i32
      %c0_i32_235 = arith.constant 0 : i32
      %c7_i32_236 = arith.constant 7 : i32
      %c0_i32_237 = arith.constant 0 : i32
      %c0_i32_238 = arith.constant 0 : i32
      %270 = tpu.memref_slice %arg2[%269, %c0_i32_238] : memref<100x128xf32, #tpu.memory_space<any>> -> memref<1x128xf32, #tpu.memory_space<any>>
      %271 = tpu.memref_squeeze %270 : memref<1x128xf32, #tpu.memory_space<any>> -> memref<128xf32, #tpu.memory_space<any>>
      %c0_i32_239 = arith.constant 0 : i32
      %272 = tpu.memref_slice %arg5[%124, %c7_i32_234, %c0_i32_235, %c0_i32_239] : memref<2x8x2x128xf32, #tpu.memory_space<vmem>> -> memref<1x1x1x128xf32, #tpu.memory_space<vmem>>
      %273 = tpu.memref_squeeze %272 : memref<1x1x1x128xf32, #tpu.memory_space<vmem>> -> memref<128xf32, #tpu.memory_space<vmem>>
      %274 = tpu.memref_slice %arg6[%124, %c7_i32_236, %c0_i32_237] : memref<2x8x2x!tpu.dma_semaphore, #tpu.memory_space<semaphore_mem>> -> memref<1x1x1x!tpu.dma_semaphore, #tpu.memory_space<semaphore_mem>>
      %275 = tpu.memref_squeeze %274 : memref<1x1x1x!tpu.dma_semaphore, #tpu.memory_space<semaphore_mem>> -> memref<!tpu.dma_semaphore, #tpu.memory_space<semaphore_mem>>
      tpu.enqueue_dma source(%271 : memref<128xf32, #tpu.memory_space<any>>) target(%273 : memref<128xf32, #tpu.memory_space<vmem>>) target_semaphore(%275 : memref<!tpu.dma_semaphore, #tpu.memory_space<semaphore_mem>>)
      %c14_i32_240 = arith.constant 14 : i32
      %276 = arith.addi %125, %c14_i32_240 : i32
      %c1_i32_241 = arith.constant 1 : i32
      %277 = arith.addi %276, %c1_i32_241 : i32
      %278 = arith.index_cast %277 : i32 to index
      %279 = memref.load %arg1[%278] : memref<32xi32, #tpu.memory_space<smem>>
      %c7_i32_242 = arith.constant 7 : i32
      %c1_i32_243 = arith.constant 1 : i32
      %c7_i32_244 = arith.constant 7 : i32
      %c1_i32_245 = arith.constant 1 : i32
      %c0_i32_246 = arith.constant 0 : i32
      %280 = tpu.memref_slice %arg2[%279, %c0_i32_246] : memref<100x128xf32, #tpu.memory_space<any>> -> memref<1x128xf32, #tpu.memory_space<any>>
      %281 = tpu.memref_squeeze %280 : memref<1x128xf32, #tpu.memory_space<any>> -> memref<128xf32, #tpu.memory_space<any>>
      %c0_i32_247 = arith.constant 0 : i32
      %282 = tpu.memref_slice %arg5[%124, %c7_i32_242, %c1_i32_243, %c0_i32_247] : memref<2x8x2x128xf32, #tpu.memory_space<vmem>> -> memref<1x1x1x128xf32, #tpu.memory_space<vmem>>
      %283 = tpu.memref_squeeze %282 : memref<1x1x1x128xf32, #tpu.memory_space<vmem>> -> memref<128xf32, #tpu.memory_space<vmem>>
      %284 = tpu.memref_slice %arg6[%124, %c7_i32_244, %c1_i32_245] : memref<2x8x2x!tpu.dma_semaphore, #tpu.memory_space<semaphore_mem>> -> memref<1x1x1x!tpu.dma_semaphore, #tpu.memory_space<semaphore_mem>>
      %285 = tpu.memref_squeeze %284 : memref<1x1x1x!tpu.dma_semaphore, #tpu.memory_space<semaphore_mem>> -> memref<!tpu.dma_semaphore, #tpu.memory_space<semaphore_mem>>
      tpu.enqueue_dma source(%281 : memref<128xf32, #tpu.memory_space<any>>) target(%283 : memref<128xf32, #tpu.memory_space<vmem>>) target_semaphore(%285 : memref<!tpu.dma_semaphore, #tpu.memory_space<semaphore_mem>>)
    } else {
    }
    %c0_i32_8 = arith.constant 0 : i32
    %c0_i32_9 = arith.constant 0 : i32
    %c0_i32_10 = arith.constant 0 : i32
    %c0_i32_11 = arith.constant 0 : i32
    %c0_i32_12 = arith.constant 0 : i32
    %c0_i32_13 = arith.constant 0 : i32
    %17 = tpu.memref_slice %arg2[%c0_i32_8, %c0_i32_13] : memref<100x128xf32, #tpu.memory_space<any>> -> memref<1x128xf32, #tpu.memory_space<any>>
    %18 = tpu.memref_squeeze %17 : memref<1x128xf32, #tpu.memory_space<any>> -> memref<128xf32, #tpu.memory_space<any>>
    %c0_i32_14 = arith.constant 0 : i32
    %19 = tpu.memref_slice %arg5[%9, %c0_i32_9, %c0_i32_10, %c0_i32_14] : memref<2x8x2x128xf32, #tpu.memory_space<vmem>> -> memref<1x1x1x128xf32, #tpu.memory_space<vmem>>
    %20 = tpu.memref_squeeze %19 : memref<1x1x1x128xf32, #tpu.memory_space<vmem>> -> memref<128xf32, #tpu.memory_space<vmem>>
    %21 = tpu.memref_slice %arg6[%9, %c0_i32_11, %c0_i32_12] : memref<2x8x2x!tpu.dma_semaphore, #tpu.memory_space<semaphore_mem>> -> memref<1x1x1x!tpu.dma_semaphore, #tpu.memory_space<semaphore_mem>>
    %22 = tpu.memref_squeeze %21 : memref<1x1x1x!tpu.dma_semaphore, #tpu.memory_space<semaphore_mem>> -> memref<!tpu.dma_semaphore, #tpu.memory_space<semaphore_mem>>
    tpu.wait_dma2 semaphore(%22 : memref<!tpu.dma_semaphore, #tpu.memory_space<semaphore_mem>>) src(%18 : memref<128xf32, #tpu.memory_space<any>>) dst(%20 : memref<128xf32, #tpu.memory_space<vmem>>)
    %c0_i32_15 = arith.constant 0 : i32
    %c0_i32_16 = arith.constant 0 : i32
    %c1_i32_17 = arith.constant 1 : i32
    %c0_i32_18 = arith.constant 0 : i32
    %c1_i32_19 = arith.constant 1 : i32
    %c0_i32_20 = arith.constant 0 : i32
    %23 = tpu.memref_slice %arg2[%c0_i32_15, %c0_i32_20] : memref<100x128xf32, #tpu.memory_space<any>> -> memref<1x128xf32, #tpu.memory_space<any>>
    %24 = tpu.memref_squeeze %23 : memref<1x128xf32, #tpu.memory_space<any>> -> memref<128xf32, #tpu.memory_space<any>>
    %c0_i32_21 = arith.constant 0 : i32
    %25 = tpu.memref_slice %arg5[%9, %c0_i32_16, %c1_i32_17, %c0_i32_21] : memref<2x8x2x128xf32, #tpu.memory_space<vmem>> -> memref<1x1x1x128xf32, #tpu.memory_space<vmem>>
    %26 = tpu.memref_squeeze %25 : memref<1x1x1x128xf32, #tpu.memory_space<vmem>> -> memref<128xf32, #tpu.memory_space<vmem>>
    %27 = tpu.memref_slice %arg6[%9, %c0_i32_18, %c1_i32_19] : memref<2x8x2x!tpu.dma_semaphore, #tpu.memory_space<semaphore_mem>> -> memref<1x1x1x!tpu.dma_semaphore, #tpu.memory_space<semaphore_mem>>
    %28 = tpu.memref_squeeze %27 : memref<1x1x1x!tpu.dma_semaphore, #tpu.memory_space<semaphore_mem>> -> memref<!tpu.dma_semaphore, #tpu.memory_space<semaphore_mem>>
    tpu.wait_dma2 semaphore(%28 : memref<!tpu.dma_semaphore, #tpu.memory_space<semaphore_mem>>) src(%24 : memref<128xf32, #tpu.memory_space<any>>) dst(%26 : memref<128xf32, #tpu.memory_space<vmem>>)
    %c0_i32_22 = arith.constant 0 : i32
    %c1_i32_23 = arith.constant 1 : i32
    %c0_i32_24 = arith.constant 0 : i32
    %c1_i32_25 = arith.constant 1 : i32
    %c0_i32_26 = arith.constant 0 : i32
    %c0_i32_27 = arith.constant 0 : i32
    %29 = tpu.memref_slice %arg2[%c0_i32_22, %c0_i32_27] : memref<100x128xf32, #tpu.memory_space<any>> -> memref<1x128xf32, #tpu.memory_space<any>>
    %30 = tpu.memref_squeeze %29 : memref<1x128xf32, #tpu.memory_space<any>> -> memref<128xf32, #tpu.memory_space<any>>
    %c0_i32_28 = arith.constant 0 : i32
    %31 = tpu.memref_slice %arg5[%9, %c1_i32_23, %c0_i32_24, %c0_i32_28] : memref<2x8x2x128xf32, #tpu.memory_space<vmem>> -> memref<1x1x1x128xf32, #tpu.memory_space<vmem>>
    %32 = tpu.memref_squeeze %31 : memref<1x1x1x128xf32, #tpu.memory_space<vmem>> -> memref<128xf32, #tpu.memory_space<vmem>>
    %33 = tpu.memref_slice %arg6[%9, %c1_i32_25, %c0_i32_26] : memref<2x8x2x!tpu.dma_semaphore, #tpu.memory_space<semaphore_mem>> -> memref<1x1x1x!tpu.dma_semaphore, #tpu.memory_space<semaphore_mem>>
    %34 = tpu.memref_squeeze %33 : memref<1x1x1x!tpu.dma_semaphore, #tpu.memory_space<semaphore_mem>> -> memref<!tpu.dma_semaphore, #tpu.memory_space<semaphore_mem>>
    tpu.wait_dma2 semaphore(%34 : memref<!tpu.dma_semaphore, #tpu.memory_space<semaphore_mem>>) src(%30 : memref<128xf32, #tpu.memory_space<any>>) dst(%32 : memref<128xf32, #tpu.memory_space<vmem>>)
    %c0_i32_29 = arith.constant 0 : i32
    %c1_i32_30 = arith.constant 1 : i32
    %c1_i32_31 = arith.constant 1 : i32
    %c1_i32_32 = arith.constant 1 : i32
    %c1_i32_33 = arith.constant 1 : i32
    %c0_i32_34 = arith.constant 0 : i32
    %35 = tpu.memref_slice %arg2[%c0_i32_29, %c0_i32_34] : memref<100x128xf32, #tpu.memory_space<any>> -> memref<1x128xf32, #tpu.memory_space<any>>
    %36 = tpu.memref_squeeze %35 : memref<1x128xf32, #tpu.memory_space<any>> -> memref<128xf32, #tpu.memory_space<any>>
    %c0_i32_35 = arith.constant 0 : i32
    %37 = tpu.memref_slice %arg5[%9, %c1_i32_30, %c1_i32_31, %c0_i32_35] : memref<2x8x2x128xf32, #tpu.memory_space<vmem>> -> memref<1x1x1x128xf32, #tpu.memory_space<vmem>>
    %38 = tpu.memref_squeeze %37 : memref<1x1x1x128xf32, #tpu.memory_space<vmem>> -> memref<128xf32, #tpu.memory_space<vmem>>
    %39 = tpu.memref_slice %arg6[%9, %c1_i32_32, %c1_i32_33] : memref<2x8x2x!tpu.dma_semaphore, #tpu.memory_space<semaphore_mem>> -> memref<1x1x1x!tpu.dma_semaphore, #tpu.memory_space<semaphore_mem>>
    %40 = tpu.memref_squeeze %39 : memref<1x1x1x!tpu.dma_semaphore, #tpu.memory_space<semaphore_mem>> -> memref<!tpu.dma_semaphore, #tpu.memory_space<semaphore_mem>>
    tpu.wait_dma2 semaphore(%40 : memref<!tpu.dma_semaphore, #tpu.memory_space<semaphore_mem>>) src(%36 : memref<128xf32, #tpu.memory_space<any>>) dst(%38 : memref<128xf32, #tpu.memory_space<vmem>>)
    %c0_i32_36 = arith.constant 0 : i32
    %c2_i32_37 = arith.constant 2 : i32
    %c0_i32_38 = arith.constant 0 : i32
    %c2_i32_39 = arith.constant 2 : i32
    %c0_i32_40 = arith.constant 0 : i32
    %c0_i32_41 = arith.constant 0 : i32
    %41 = tpu.memref_slice %arg2[%c0_i32_36, %c0_i32_41] : memref<100x128xf32, #tpu.memory_space<any>> -> memref<1x128xf32, #tpu.memory_space<any>>
    %42 = tpu.memref_squeeze %41 : memref<1x128xf32, #tpu.memory_space<any>> -> memref<128xf32, #tpu.memory_space<any>>
    %c0_i32_42 = arith.constant 0 : i32
    %43 = tpu.memref_slice %arg5[%9, %c2_i32_37, %c0_i32_38, %c0_i32_42] : memref<2x8x2x128xf32, #tpu.memory_space<vmem>> -> memref<1x1x1x128xf32, #tpu.memory_space<vmem>>
    %44 = tpu.memref_squeeze %43 : memref<1x1x1x128xf32, #tpu.memory_space<vmem>> -> memref<128xf32, #tpu.memory_space<vmem>>
    %45 = tpu.memref_slice %arg6[%9, %c2_i32_39, %c0_i32_40] : memref<2x8x2x!tpu.dma_semaphore, #tpu.memory_space<semaphore_mem>> -> memref<1x1x1x!tpu.dma_semaphore, #tpu.memory_space<semaphore_mem>>
    %46 = tpu.memref_squeeze %45 : memref<1x1x1x!tpu.dma_semaphore, #tpu.memory_space<semaphore_mem>> -> memref<!tpu.dma_semaphore, #tpu.memory_space<semaphore_mem>>
    tpu.wait_dma2 semaphore(%46 : memref<!tpu.dma_semaphore, #tpu.memory_space<semaphore_mem>>) src(%42 : memref<128xf32, #tpu.memory_space<any>>) dst(%44 : memref<128xf32, #tpu.memory_space<vmem>>)
    %c0_i32_43 = arith.constant 0 : i32
    %c2_i32_44 = arith.constant 2 : i32
    %c1_i32_45 = arith.constant 1 : i32
    %c2_i32_46 = arith.constant 2 : i32
    %c1_i32_47 = arith.constant 1 : i32
    %c0_i32_48 = arith.constant 0 : i32
    %47 = tpu.memref_slice %arg2[%c0_i32_43, %c0_i32_48] : memref<100x128xf32, #tpu.memory_space<any>> -> memref<1x128xf32, #tpu.memory_space<any>>
    %48 = tpu.memref_squeeze %47 : memref<1x128xf32, #tpu.memory_space<any>> -> memref<128xf32, #tpu.memory_space<any>>
    %c0_i32_49 = arith.constant 0 : i32
    %49 = tpu.memref_slice %arg5[%9, %c2_i32_44, %c1_i32_45, %c0_i32_49] : memref<2x8x2x128xf32, #tpu.memory_space<vmem>> -> memref<1x1x1x128xf32, #tpu.memory_space<vmem>>
    %50 = tpu.memref_squeeze %49 : memref<1x1x1x128xf32, #tpu.memory_space<vmem>> -> memref<128xf32, #tpu.memory_space<vmem>>
    %51 = tpu.memref_slice %arg6[%9, %c2_i32_46, %c1_i32_47] : memref<2x8x2x!tpu.dma_semaphore, #tpu.memory_space<semaphore_mem>> -> memref<1x1x1x!tpu.dma_semaphore, #tpu.memory_space<semaphore_mem>>
    %52 = tpu.memref_squeeze %51 : memref<1x1x1x!tpu.dma_semaphore, #tpu.memory_space<semaphore_mem>> -> memref<!tpu.dma_semaphore, #tpu.memory_space<semaphore_mem>>
    tpu.wait_dma2 semaphore(%52 : memref<!tpu.dma_semaphore, #tpu.memory_space<semaphore_mem>>) src(%48 : memref<128xf32, #tpu.memory_space<any>>) dst(%50 : memref<128xf32, #tpu.memory_space<vmem>>)
    %c0_i32_50 = arith.constant 0 : i32
    %c3_i32 = arith.constant 3 : i32
    %c0_i32_51 = arith.constant 0 : i32
    %c3_i32_52 = arith.constant 3 : i32
    %c0_i32_53 = arith.constant 0 : i32
    %c0_i32_54 = arith.constant 0 : i32
    %53 = tpu.memref_slice %arg2[%c0_i32_50, %c0_i32_54] : memref<100x128xf32, #tpu.memory_space<any>> -> memref<1x128xf32, #tpu.memory_space<any>>
    %54 = tpu.memref_squeeze %53 : memref<1x128xf32, #tpu.memory_space<any>> -> memref<128xf32, #tpu.memory_space<any>>
    %c0_i32_55 = arith.constant 0 : i32
    %55 = tpu.memref_slice %arg5[%9, %c3_i32, %c0_i32_51, %c0_i32_55] : memref<2x8x2x128xf32, #tpu.memory_space<vmem>> -> memref<1x1x1x128xf32, #tpu.memory_space<vmem>>
    %56 = tpu.memref_squeeze %55 : memref<1x1x1x128xf32, #tpu.memory_space<vmem>> -> memref<128xf32, #tpu.memory_space<vmem>>
    %57 = tpu.memref_slice %arg6[%9, %c3_i32_52, %c0_i32_53] : memref<2x8x2x!tpu.dma_semaphore, #tpu.memory_space<semaphore_mem>> -> memref<1x1x1x!tpu.dma_semaphore, #tpu.memory_space<semaphore_mem>>
    %58 = tpu.memref_squeeze %57 : memref<1x1x1x!tpu.dma_semaphore, #tpu.memory_space<semaphore_mem>> -> memref<!tpu.dma_semaphore, #tpu.memory_space<semaphore_mem>>
    tpu.wait_dma2 semaphore(%58 : memref<!tpu.dma_semaphore, #tpu.memory_space<semaphore_mem>>) src(%54 : memref<128xf32, #tpu.memory_space<any>>) dst(%56 : memref<128xf32, #tpu.memory_space<vmem>>)
    %c0_i32_56 = arith.constant 0 : i32
    %c3_i32_57 = arith.constant 3 : i32
    %c1_i32_58 = arith.constant 1 : i32
    %c3_i32_59 = arith.constant 3 : i32
    %c1_i32_60 = arith.constant 1 : i32
    %c0_i32_61 = arith.constant 0 : i32
    %59 = tpu.memref_slice %arg2[%c0_i32_56, %c0_i32_61] : memref<100x128xf32, #tpu.memory_space<any>> -> memref<1x128xf32, #tpu.memory_space<any>>
    %60 = tpu.memref_squeeze %59 : memref<1x128xf32, #tpu.memory_space<any>> -> memref<128xf32, #tpu.memory_space<any>>
    %c0_i32_62 = arith.constant 0 : i32
    %61 = tpu.memref_slice %arg5[%9, %c3_i32_57, %c1_i32_58, %c0_i32_62] : memref<2x8x2x128xf32, #tpu.memory_space<vmem>> -> memref<1x1x1x128xf32, #tpu.memory_space<vmem>>
    %62 = tpu.memref_squeeze %61 : memref<1x1x1x128xf32, #tpu.memory_space<vmem>> -> memref<128xf32, #tpu.memory_space<vmem>>
    %63 = tpu.memref_slice %arg6[%9, %c3_i32_59, %c1_i32_60] : memref<2x8x2x!tpu.dma_semaphore, #tpu.memory_space<semaphore_mem>> -> memref<1x1x1x!tpu.dma_semaphore, #tpu.memory_space<semaphore_mem>>
    %64 = tpu.memref_squeeze %63 : memref<1x1x1x!tpu.dma_semaphore, #tpu.memory_space<semaphore_mem>> -> memref<!tpu.dma_semaphore, #tpu.memory_space<semaphore_mem>>
    tpu.wait_dma2 semaphore(%64 : memref<!tpu.dma_semaphore, #tpu.memory_space<semaphore_mem>>) src(%60 : memref<128xf32, #tpu.memory_space<any>>) dst(%62 : memref<128xf32, #tpu.memory_space<vmem>>)
    %c0_i32_63 = arith.constant 0 : i32
    %c4_i32 = arith.constant 4 : i32
    %c0_i32_64 = arith.constant 0 : i32
    %c4_i32_65 = arith.constant 4 : i32
    %c0_i32_66 = arith.constant 0 : i32
    %c0_i32_67 = arith.constant 0 : i32
    %65 = tpu.memref_slice %arg2[%c0_i32_63, %c0_i32_67] : memref<100x128xf32, #tpu.memory_space<any>> -> memref<1x128xf32, #tpu.memory_space<any>>
    %66 = tpu.memref_squeeze %65 : memref<1x128xf32, #tpu.memory_space<any>> -> memref<128xf32, #tpu.memory_space<any>>
    %c0_i32_68 = arith.constant 0 : i32
    %67 = tpu.memref_slice %arg5[%9, %c4_i32, %c0_i32_64, %c0_i32_68] : memref<2x8x2x128xf32, #tpu.memory_space<vmem>> -> memref<1x1x1x128xf32, #tpu.memory_space<vmem>>
    %68 = tpu.memref_squeeze %67 : memref<1x1x1x128xf32, #tpu.memory_space<vmem>> -> memref<128xf32, #tpu.memory_space<vmem>>
    %69 = tpu.memref_slice %arg6[%9, %c4_i32_65, %c0_i32_66] : memref<2x8x2x!tpu.dma_semaphore, #tpu.memory_space<semaphore_mem>> -> memref<1x1x1x!tpu.dma_semaphore, #tpu.memory_space<semaphore_mem>>
    %70 = tpu.memref_squeeze %69 : memref<1x1x1x!tpu.dma_semaphore, #tpu.memory_space<semaphore_mem>> -> memref<!tpu.dma_semaphore, #tpu.memory_space<semaphore_mem>>
    tpu.wait_dma2 semaphore(%70 : memref<!tpu.dma_semaphore, #tpu.memory_space<semaphore_mem>>) src(%66 : memref<128xf32, #tpu.memory_space<any>>) dst(%68 : memref<128xf32, #tpu.memory_space<vmem>>)
    %c0_i32_69 = arith.constant 0 : i32
    %c4_i32_70 = arith.constant 4 : i32
    %c1_i32_71 = arith.constant 1 : i32
    %c4_i32_72 = arith.constant 4 : i32
    %c1_i32_73 = arith.constant 1 : i32
    %c0_i32_74 = arith.constant 0 : i32
    %71 = tpu.memref_slice %arg2[%c0_i32_69, %c0_i32_74] : memref<100x128xf32, #tpu.memory_space<any>> -> memref<1x128xf32, #tpu.memory_space<any>>
    %72 = tpu.memref_squeeze %71 : memref<1x128xf32, #tpu.memory_space<any>> -> memref<128xf32, #tpu.memory_space<any>>
    %c0_i32_75 = arith.constant 0 : i32
    %73 = tpu.memref_slice %arg5[%9, %c4_i32_70, %c1_i32_71, %c0_i32_75] : memref<2x8x2x128xf32, #tpu.memory_space<vmem>> -> memref<1x1x1x128xf32, #tpu.memory_space<vmem>>
    %74 = tpu.memref_squeeze %73 : memref<1x1x1x128xf32, #tpu.memory_space<vmem>> -> memref<128xf32, #tpu.memory_space<vmem>>
    %75 = tpu.memref_slice %arg6[%9, %c4_i32_72, %c1_i32_73] : memref<2x8x2x!tpu.dma_semaphore, #tpu.memory_space<semaphore_mem>> -> memref<1x1x1x!tpu.dma_semaphore, #tpu.memory_space<semaphore_mem>>
    %76 = tpu.memref_squeeze %75 : memref<1x1x1x!tpu.dma_semaphore, #tpu.memory_space<semaphore_mem>> -> memref<!tpu.dma_semaphore, #tpu.memory_space<semaphore_mem>>
    tpu.wait_dma2 semaphore(%76 : memref<!tpu.dma_semaphore, #tpu.memory_space<semaphore_mem>>) src(%72 : memref<128xf32, #tpu.memory_space<any>>) dst(%74 : memref<128xf32, #tpu.memory_space<vmem>>)
    %c0_i32_76 = arith.constant 0 : i32
    %c5_i32 = arith.constant 5 : i32
    %c0_i32_77 = arith.constant 0 : i32
    %c5_i32_78 = arith.constant 5 : i32
    %c0_i32_79 = arith.constant 0 : i32
    %c0_i32_80 = arith.constant 0 : i32
    %77 = tpu.memref_slice %arg2[%c0_i32_76, %c0_i32_80] : memref<100x128xf32, #tpu.memory_space<any>> -> memref<1x128xf32, #tpu.memory_space<any>>
    %78 = tpu.memref_squeeze %77 : memref<1x128xf32, #tpu.memory_space<any>> -> memref<128xf32, #tpu.memory_space<any>>
    %c0_i32_81 = arith.constant 0 : i32
    %79 = tpu.memref_slice %arg5[%9, %c5_i32, %c0_i32_77, %c0_i32_81] : memref<2x8x2x128xf32, #tpu.memory_space<vmem>> -> memref<1x1x1x128xf32, #tpu.memory_space<vmem>>
    %80 = tpu.memref_squeeze %79 : memref<1x1x1x128xf32, #tpu.memory_space<vmem>> -> memref<128xf32, #tpu.memory_space<vmem>>
    %81 = tpu.memref_slice %arg6[%9, %c5_i32_78, %c0_i32_79] : memref<2x8x2x!tpu.dma_semaphore, #tpu.memory_space<semaphore_mem>> -> memref<1x1x1x!tpu.dma_semaphore, #tpu.memory_space<semaphore_mem>>
    %82 = tpu.memref_squeeze %81 : memref<1x1x1x!tpu.dma_semaphore, #tpu.memory_space<semaphore_mem>> -> memref<!tpu.dma_semaphore, #tpu.memory_space<semaphore_mem>>
    tpu.wait_dma2 semaphore(%82 : memref<!tpu.dma_semaphore, #tpu.memory_space<semaphore_mem>>) src(%78 : memref<128xf32, #tpu.memory_space<any>>) dst(%80 : memref<128xf32, #tpu.memory_space<vmem>>)
    %c0_i32_82 = arith.constant 0 : i32
    %c5_i32_83 = arith.constant 5 : i32
    %c1_i32_84 = arith.constant 1 : i32
    %c5_i32_85 = arith.constant 5 : i32
    %c1_i32_86 = arith.constant 1 : i32
    %c0_i32_87 = arith.constant 0 : i32
    %83 = tpu.memref_slice %arg2[%c0_i32_82, %c0_i32_87] : memref<100x128xf32, #tpu.memory_space<any>> -> memref<1x128xf32, #tpu.memory_space<any>>
    %84 = tpu.memref_squeeze %83 : memref<1x128xf32, #tpu.memory_space<any>> -> memref<128xf32, #tpu.memory_space<any>>
    %c0_i32_88 = arith.constant 0 : i32
    %85 = tpu.memref_slice %arg5[%9, %c5_i32_83, %c1_i32_84, %c0_i32_88] : memref<2x8x2x128xf32, #tpu.memory_space<vmem>> -> memref<1x1x1x128xf32, #tpu.memory_space<vmem>>
    %86 = tpu.memref_squeeze %85 : memref<1x1x1x128xf32, #tpu.memory_space<vmem>> -> memref<128xf32, #tpu.memory_space<vmem>>
    %87 = tpu.memref_slice %arg6[%9, %c5_i32_85, %c1_i32_86] : memref<2x8x2x!tpu.dma_semaphore, #tpu.memory_space<semaphore_mem>> -> memref<1x1x1x!tpu.dma_semaphore, #tpu.memory_space<semaphore_mem>>
    %88 = tpu.memref_squeeze %87 : memref<1x1x1x!tpu.dma_semaphore, #tpu.memory_space<semaphore_mem>> -> memref<!tpu.dma_semaphore, #tpu.memory_space<semaphore_mem>>
    tpu.wait_dma2 semaphore(%88 : memref<!tpu.dma_semaphore, #tpu.memory_space<semaphore_mem>>) src(%84 : memref<128xf32, #tpu.memory_space<any>>) dst(%86 : memref<128xf32, #tpu.memory_space<vmem>>)
    %c0_i32_89 = arith.constant 0 : i32
    %c6_i32 = arith.constant 6 : i32
    %c0_i32_90 = arith.constant 0 : i32
    %c6_i32_91 = arith.constant 6 : i32
    %c0_i32_92 = arith.constant 0 : i32
    %c0_i32_93 = arith.constant 0 : i32
    %89 = tpu.memref_slice %arg2[%c0_i32_89, %c0_i32_93] : memref<100x128xf32, #tpu.memory_space<any>> -> memref<1x128xf32, #tpu.memory_space<any>>
    %90 = tpu.memref_squeeze %89 : memref<1x128xf32, #tpu.memory_space<any>> -> memref<128xf32, #tpu.memory_space<any>>
    %c0_i32_94 = arith.constant 0 : i32
    %91 = tpu.memref_slice %arg5[%9, %c6_i32, %c0_i32_90, %c0_i32_94] : memref<2x8x2x128xf32, #tpu.memory_space<vmem>> -> memref<1x1x1x128xf32, #tpu.memory_space<vmem>>
    %92 = tpu.memref_squeeze %91 : memref<1x1x1x128xf32, #tpu.memory_space<vmem>> -> memref<128xf32, #tpu.memory_space<vmem>>
    %93 = tpu.memref_slice %arg6[%9, %c6_i32_91, %c0_i32_92] : memref<2x8x2x!tpu.dma_semaphore, #tpu.memory_space<semaphore_mem>> -> memref<1x1x1x!tpu.dma_semaphore, #tpu.memory_space<semaphore_mem>>
    %94 = tpu.memref_squeeze %93 : memref<1x1x1x!tpu.dma_semaphore, #tpu.memory_space<semaphore_mem>> -> memref<!tpu.dma_semaphore, #tpu.memory_space<semaphore_mem>>
    tpu.wait_dma2 semaphore(%94 : memref<!tpu.dma_semaphore, #tpu.memory_space<semaphore_mem>>) src(%90 : memref<128xf32, #tpu.memory_space<any>>) dst(%92 : memref<128xf32, #tpu.memory_space<vmem>>)
    %c0_i32_95 = arith.constant 0 : i32
    %c6_i32_96 = arith.constant 6 : i32
    %c1_i32_97 = arith.constant 1 : i32
    %c6_i32_98 = arith.constant 6 : i32
    %c1_i32_99 = arith.constant 1 : i32
    %c0_i32_100 = arith.constant 0 : i32
    %95 = tpu.memref_slice %arg2[%c0_i32_95, %c0_i32_100] : memref<100x128xf32, #tpu.memory_space<any>> -> memref<1x128xf32, #tpu.memory_space<any>>
    %96 = tpu.memref_squeeze %95 : memref<1x128xf32, #tpu.memory_space<any>> -> memref<128xf32, #tpu.memory_space<any>>
    %c0_i32_101 = arith.constant 0 : i32
    %97 = tpu.memref_slice %arg5[%9, %c6_i32_96, %c1_i32_97, %c0_i32_101] : memref<2x8x2x128xf32, #tpu.memory_space<vmem>> -> memref<1x1x1x128xf32, #tpu.memory_space<vmem>>
    %98 = tpu.memref_squeeze %97 : memref<1x1x1x128xf32, #tpu.memory_space<vmem>> -> memref<128xf32, #tpu.memory_space<vmem>>
    %99 = tpu.memref_slice %arg6[%9, %c6_i32_98, %c1_i32_99] : memref<2x8x2x!tpu.dma_semaphore, #tpu.memory_space<semaphore_mem>> -> memref<1x1x1x!tpu.dma_semaphore, #tpu.memory_space<semaphore_mem>>
    %100 = tpu.memref_squeeze %99 : memref<1x1x1x!tpu.dma_semaphore, #tpu.memory_space<semaphore_mem>> -> memref<!tpu.dma_semaphore, #tpu.memory_space<semaphore_mem>>
    tpu.wait_dma2 semaphore(%100 : memref<!tpu.dma_semaphore, #tpu.memory_space<semaphore_mem>>) src(%96 : memref<128xf32, #tpu.memory_space<any>>) dst(%98 : memref<128xf32, #tpu.memory_space<vmem>>)
    %c0_i32_102 = arith.constant 0 : i32
    %c7_i32 = arith.constant 7 : i32
    %c0_i32_103 = arith.constant 0 : i32
    %c7_i32_104 = arith.constant 7 : i32
    %c0_i32_105 = arith.constant 0 : i32
    %c0_i32_106 = arith.constant 0 : i32
    %101 = tpu.memref_slice %arg2[%c0_i32_102, %c0_i32_106] : memref<100x128xf32, #tpu.memory_space<any>> -> memref<1x128xf32, #tpu.memory_space<any>>
    %102 = tpu.memref_squeeze %101 : memref<1x128xf32, #tpu.memory_space<any>> -> memref<128xf32, #tpu.memory_space<any>>
    %c0_i32_107 = arith.constant 0 : i32
    %103 = tpu.memref_slice %arg5[%9, %c7_i32, %c0_i32_103, %c0_i32_107] : memref<2x8x2x128xf32, #tpu.memory_space<vmem>> -> memref<1x1x1x128xf32, #tpu.memory_space<vmem>>
    %104 = tpu.memref_squeeze %103 : memref<1x1x1x128xf32, #tpu.memory_space<vmem>> -> memref<128xf32, #tpu.memory_space<vmem>>
    %105 = tpu.memref_slice %arg6[%9, %c7_i32_104, %c0_i32_105] : memref<2x8x2x!tpu.dma_semaphore, #tpu.memory_space<semaphore_mem>> -> memref<1x1x1x!tpu.dma_semaphore, #tpu.memory_space<semaphore_mem>>
    %106 = tpu.memref_squeeze %105 : memref<1x1x1x!tpu.dma_semaphore, #tpu.memory_space<semaphore_mem>> -> memref<!tpu.dma_semaphore, #tpu.memory_space<semaphore_mem>>
    tpu.wait_dma2 semaphore(%106 : memref<!tpu.dma_semaphore, #tpu.memory_space<semaphore_mem>>) src(%102 : memref<128xf32, #tpu.memory_space<any>>) dst(%104 : memref<128xf32, #tpu.memory_space<vmem>>)
    %c0_i32_108 = arith.constant 0 : i32
    %c7_i32_109 = arith.constant 7 : i32
    %c1_i32_110 = arith.constant 1 : i32
    %c7_i32_111 = arith.constant 7 : i32
    %c1_i32_112 = arith.constant 1 : i32
    %c0_i32_113 = arith.constant 0 : i32
    %107 = tpu.memref_slice %arg2[%c0_i32_108, %c0_i32_113] : memref<100x128xf32, #tpu.memory_space<any>> -> memref<1x128xf32, #tpu.memory_space<any>>
    %108 = tpu.memref_squeeze %107 : memref<1x128xf32, #tpu.memory_space<any>> -> memref<128xf32, #tpu.memory_space<any>>
    %c0_i32_114 = arith.constant 0 : i32
    %109 = tpu.memref_slice %arg5[%9, %c7_i32_109, %c1_i32_110, %c0_i32_114] : memref<2x8x2x128xf32, #tpu.memory_space<vmem>> -> memref<1x1x1x128xf32, #tpu.memory_space<vmem>>
    %110 = tpu.memref_squeeze %109 : memref<1x1x1x128xf32, #tpu.memory_space<vmem>> -> memref<128xf32, #tpu.memory_space<vmem>>
    %111 = tpu.memref_slice %arg6[%9, %c7_i32_111, %c1_i32_112] : memref<2x8x2x!tpu.dma_semaphore, #tpu.memory_space<semaphore_mem>> -> memref<1x1x1x!tpu.dma_semaphore, #tpu.memory_space<semaphore_mem>>
    %112 = tpu.memref_squeeze %111 : memref<1x1x1x!tpu.dma_semaphore, #tpu.memory_space<semaphore_mem>> -> memref<!tpu.dma_semaphore, #tpu.memory_space<semaphore_mem>>
    tpu.wait_dma2 semaphore(%112 : memref<!tpu.dma_semaphore, #tpu.memory_space<semaphore_mem>>) src(%108 : memref<128xf32, #tpu.memory_space<any>>) dst(%110 : memref<128xf32, #tpu.memory_space<vmem>>)
    %113 = arith.index_cast %9 : i32 to index
    %c0 = arith.constant 0 : index
    %c0_115 = arith.constant 0 : index
    %c0_116 = arith.constant 0 : index
    %114 = vector.load %arg5[%113, %c0, %c0_115, %c0_116] : memref<2x8x2x128xf32, #tpu.memory_space<vmem>>, vector<1x8x2x128xf32>
    %115 = vector.shape_cast %114 : vector<1x8x2x128xf32> to vector<8x2x128xf32>
    %c0_117 = arith.constant 0 : index
    %c0_118 = arith.constant 0 : index
    %116 = vector.load %arg3[%c0_117, %c0_118] : memref<8x128xf32, #tpu.memory_space<vmem>>, vector<8x128xf32>
    %cst = arith.constant 11.3137083 : f32
    %117 = vector.broadcast %cst : f32 to vector<8x2x128xf32>
    %118 = arith.mulf %115, %117 : vector<8x2x128xf32>
    %119 = vector.shape_cast %116 : vector<8x128xf32> to vector<8x1x128xf32>
    %120 = vector.broadcast %119 : vector<8x1x128xf32> to vector<8x2x128xf32>
    %121 = arith.addf %118, %120 : vector<8x2x128xf32>
    %c0_119 = arith.constant 0 : index
    %c0_120 = arith.constant 0 : index
    %c0_121 = arith.constant 0 : index
    %122 = vector.load %arg4[%c0_119, %c0_120, %c0_121] : memref<8x2x128xf32, #tpu.memory_space<vmem>>, vector<8x2x128xf32>
    tpu.vector_store %arg4[%c0_119, %c0_120, %c0_121], %121 {strides = array<i32>} : memref<8x2x128xf32, #tpu.memory_space<vmem>>, vector<8x2x128xf32>,
    return
  }
  func.func @transform_1(%arg0: i32, %arg1: memref<32xi32, #tpu.memory_space<smem>>) -> (i32, i32) {
    %c0_i32 = arith.constant 0 : i32
    %c0_i32_0 = arith.constant 0 : i32
    return %arg0, %c0_i32 : i32, i32
  }
  func.func @transform_2(%arg0: i32, %arg1: memref<32xi32, #tpu.memory_space<smem>>) -> (i32, i32, i32) {
    %c0_i32 = arith.constant 0 : i32
    %c0_i32_0 = arith.constant 0 : i32
    %c0_i32_1 = arith.constant 0 : i32
    return %arg0, %c0_i32, %c0_i32_0 : i32, i32, i32
  }
}

</mosaic_0001>

<llo_original>
// kernel: tpu_custom_call.1
$region0: #{tpu_custom_call.1}
  #allocation0 [shape = 'u32[]', space=smem, size = 0x4, offset = 0x4, fixed_abs, tag = 'smem constant byte address 0x4 - core index']
  #allocation1 [shape = 'u32[144,128]{1,0:T(1,128)}', space=vmem, size = 0x12000, scoped, tag = 'internal scratch']
  #allocation2 [shape = 'f32[2,8,2,128]{3,2,1,0:T(2,128)}', space=vmem, size = 0x4000, scoped, tag = 'scratch operand']
  #allocation3 [shape = 's32[32]{0}', space=sflag, size = 0x80, scoped, tag = 'scratch operand']
  #allocation4 [shape = 's32[1]{0}', space=sflag, size = 0x4, scoped, tag = 'scoped memory for tpu_custom_call.1']
  #allocation5 [shape = 'u8[512]{0}', space=smem, size = 0x200, scoped, tag = 'prefetched SMEM operand 0']
  #allocation10 [shape = 's32[]', space=sflag, size = 0x4, offset = 0, fixed_abs, tag = 'sflag constant byte address 0x0 - dummy sync flag']
  #allocation11 [shape = 's32[]', space=sflag, size = 0x4, offset = 0, fixed_abs, tag = 'sflag constant byte address 0x0 - dummy sync flag']
  #allocation12 [shape = 'u32[]', space=smem, size = 0x4, offset = 0x44, fixed_abs, tag = 'smem constant byte address 0x44 - assertion arg 0']
  #allocation13 [shape = 'u32[]', space=smem, size = 0x4, offset = 0x48, fixed_abs, tag = 'smem constant byte address 0x48 - assertion arg 1']
  #allocation14 [shape = 's32[]', space=sflag, size = 0x4, offset = 0, fixed_abs, tag = 'sflag constant byte address 0x0 - dummy sync flag']
  #allocation15 [shape = 's32[]', space=sflag, size = 0x4, offset = 0, fixed_abs, tag = 'sflag constant byte address 0x0 - dummy sync flag']
  #allocation16 [shape = 's32[]', space=sflag, size = 0x4, offset = 0, fixed_abs, tag = 'sflag constant byte address 0x0 - dummy sync flag']
  #allocation17 [shape = 's32[]', space=sflag, size = 0x4, offset = 0, fixed_abs, tag = 'sflag constant byte address 0x0 - dummy sync flag']
  #allocation18 [shape = 's32[]', space=sflag, size = 0x4, offset = 0, fixed_abs, tag = 'sflag constant byte address 0x0 - dummy sync flag']
  #allocation19 [shape = 's32[]', space=sflag, size = 0x4, offset = 0, fixed_abs, tag = 'sflag constant byte address 0x0 - dummy sync flag']
  #allocation20 [shape = 's32[]', space=sflag, size = 0x4, offset = 0, fixed_abs, tag = 'sflag constant byte address 0x0 - dummy sync flag']
  #allocation21 [shape = 's32[]', space=sflag, size = 0x4, offset = 0, fixed_abs, tag = 'sflag constant byte address 0x0 - dummy sync flag']
  #allocation22 [shape = 's32[]', space=sflag, size = 0x4, offset = 0, fixed_abs, tag = 'sflag constant byte address 0x0 - dummy sync flag']
  #allocation23 [shape = 's32[]', space=sflag, size = 0x4, offset = 0, fixed_abs, tag = 'sflag constant byte address 0x0 - dummy sync flag']
  #allocation24 [shape = 's32[]', space=sflag, size = 0x4, offset = 0, fixed_abs, tag = 'sflag constant byte address 0x0 - dummy sync flag']
  #allocation25 [shape = 's32[]', space=sflag, size = 0x4, offset = 0, fixed_abs, tag = 'sflag constant byte address 0x0 - dummy sync flag']
  #allocation26 [shape = 's32[]', space=sflag, size = 0x4, offset = 0, fixed_abs, tag = 'sflag constant byte address 0x0 - dummy sync flag']
  #allocation27 [shape = 's32[]', space=sflag, size = 0x4, offset = 0, fixed_abs, tag = 'sflag constant byte address 0x0 - dummy sync flag']
  #allocation28 [shape = 's32[]', space=sflag, size = 0x4, offset = 0, fixed_abs, tag = 'sflag constant byte address 0x0 - dummy sync flag']
  #allocation29 [shape = 's32[]', space=sflag, size = 0x4, offset = 0, fixed_abs, tag = 'sflag constant byte address 0x0 - dummy sync flag']
  #allocation30 [shape = 's32[]', space=sflag, size = 0x4, offset = 0, fixed_abs, tag = 'sflag constant byte address 0x0 - dummy sync flag']
  #allocation31 [shape = 's32[]', space=sflag, size = 0x4, offset = 0, fixed_abs, tag = 'sflag constant byte address 0x0 - dummy sync flag']
  #allocation32 [shape = 's32[]', space=sflag, size = 0x4, offset = 0, fixed_abs, tag = 'sflag constant byte address 0x0 - dummy sync flag']
  #allocation33 [shape = 's32[]', space=sflag, size = 0x4, offset = 0, fixed_abs, tag = 'sflag constant byte address 0x0 - dummy sync flag']
  #allocation34 [shape = 's32[]', space=sflag, size = 0x4, offset = 0, fixed_abs, tag = 'sflag constant byte address 0x0 - dummy sync flag']
  #allocation35 [shape = 's32[]', space=sflag, size = 0x4, offset = 0, fixed_abs, tag = 'sflag constant byte address 0x0 - dummy sync flag']
  #allocation36 [shape = 's32[]', space=sflag, size = 0x4, offset = 0, fixed_abs, tag = 'sflag constant byte address 0x0 - dummy sync flag']
  #allocation37 [shape = 's32[]', space=sflag, size = 0x4, offset = 0, fixed_abs, tag = 'sflag constant byte address 0x0 - dummy sync flag']
  #allocation38 [shape = 's32[]', space=sflag, size = 0x4, offset = 0, fixed_abs, tag = 'sflag constant byte address 0x0 - dummy sync flag']
  #allocation39 [shape = 's32[]', space=sflag, size = 0x4, offset = 0, fixed_abs, tag = 'sflag constant byte address 0x0 - dummy sync flag']
  #allocation40 [shape = 's32[]', space=sflag, size = 0x4, offset = 0, fixed_abs, tag = 'sflag constant byte address 0x0 - dummy sync flag']
  #allocation41 [shape = 's32[]', space=sflag, size = 0x4, offset = 0, fixed_abs, tag = 'sflag constant byte address 0x0 - dummy sync flag']
  #allocation42 [shape = 's32[]', space=sflag, size = 0x4, offset = 0, fixed_abs, tag = 'sflag constant byte address 0x0 - dummy sync flag']
  #allocation43 [shape = 's32[]', space=sflag, size = 0x4, offset = 0, fixed_abs, tag = 'sflag constant byte address 0x0 - dummy sync flag']
  #allocation44 [shape = 's32[]', space=sflag, size = 0x4, offset = 0, fixed_abs, tag = 'sflag constant byte address 0x0 - dummy sync flag']
  #allocation45 [shape = 's32[]', space=sflag, size = 0x4, offset = 0, fixed_abs, tag = 'sflag constant byte address 0x0 - dummy sync flag']
  #allocation46 [shape = 's32[]', space=sflag, size = 0x4, offset = 0, fixed_abs, tag = 'sflag constant byte address 0x0 - dummy sync flag']
  #allocation47 [shape = 's32[]', space=sflag, size = 0x4, offset = 0, fixed_abs, tag = 'sflag constant byte address 0x0 - dummy sync flag']
  #allocation48 [shape = 's32[]', space=sflag, size = 0x4, offset = 0, fixed_abs, tag = 'sflag constant byte address 0x0 - dummy sync flag']
  #allocation49 [shape = 's32[]', space=sflag, size = 0x4, offset = 0, fixed_abs, tag = 'sflag constant byte address 0x0 - dummy sync flag']
  #allocation50 [shape = 's32[]', space=sflag, size = 0x4, offset = 0, fixed_abs, tag = 'sflag constant byte address 0x0 - dummy sync flag']
  #allocation51 [shape = 's32[]', space=sflag, size = 0x4, offset = 0, fixed_abs, tag = 'sflag constant byte address 0x0 - dummy sync flag']
  #allocation52 [shape = 's32[]', space=sflag, size = 0x4, offset = 0, fixed_abs, tag = 'sflag constant byte address 0x0 - dummy sync flag']
  #allocation53 [shape = 's32[]', space=sflag, size = 0x4, offset = 0, fixed_abs, tag = 'sflag constant byte address 0x0 - dummy sync flag']
  #allocation54 [shape = 's32[]', space=sflag, size = 0x4, offset = 0, fixed_abs, tag = 'sflag constant byte address 0x0 - dummy sync flag']
  #allocation55 [shape = 's32[]', space=sflag, size = 0x4, offset = 0, fixed_abs, tag = 'sflag constant byte address 0x0 - dummy sync flag']
  #allocation56 [shape = 's32[]', space=sflag, size = 0x4, offset = 0, fixed_abs, tag = 'sflag constant byte address 0x0 - dummy sync flag']
  #allocation57 [shape = 's32[]', space=sflag, size = 0x4, offset = 0, fixed_abs, tag = 'sflag constant byte address 0x0 - dummy sync flag']
  #allocation58 [shape = 's32[]', space=sflag, size = 0x4, offset = 0, fixed_abs, tag = 'sflag constant byte address 0x0 - dummy sync flag']
  #allocation59 [shape = 's32[]', space=sflag, size = 0x4, offset = 0, fixed_abs, tag = 'sflag constant byte address 0x0 - dummy sync flag']
  #allocation60 [shape = 's32[]', space=sflag, size = 0x4, offset = 0, fixed_abs, tag = 'sflag constant byte address 0x0 - dummy sync flag']
  #allocation61 [shape = 's32[]', space=sflag, size = 0x4, offset = 0, fixed_abs, tag = 'sflag constant byte address 0x0 - dummy sync flag']
  #allocation62 [shape = 's32[]', space=sflag, size = 0x4, offset = 0, fixed_abs, tag = 'sflag constant byte address 0x0 - dummy sync flag']
  #allocation63 [shape = 's32[]', space=sflag, size = 0x4, offset = 0, fixed_abs, tag = 'sflag constant byte address 0x0 - dummy sync flag']
  #allocation64 [shape = 's32[]', space=sflag, size = 0x4, offset = 0, fixed_abs, tag = 'sflag constant byte address 0x0 - dummy sync flag']
  #allocation65 [shape = 's32[]', space=sflag, size = 0x4, offset = 0, fixed_abs, tag = 'sflag constant byte address 0x0 - dummy sync flag']
  #allocation66 [shape = 's32[]', space=sflag, size = 0x4, offset = 0, fixed_abs, tag = 'sflag constant byte address 0x0 - dummy sync flag']
  #allocation67 [shape = 's32[]', space=sflag, size = 0x4, offset = 0, fixed_abs, tag = 'sflag constant byte address 0x0 - dummy sync flag']
  #allocation68 [shape = 's32[]', space=sflag, size = 0x4, offset = 0, fixed_abs, tag = 'sflag constant byte address 0x0 - dummy sync flag']
  #allocation69 [shape = 's32[]', space=sflag, size = 0x4, offset = 0, fixed_abs, tag = 'sflag constant byte address 0x0 - dummy sync flag']
  #allocation70 [shape = 's32[]', space=sflag, size = 0x4, offset = 0, fixed_abs, tag = 'sflag constant byte address 0x0 - dummy sync flag']
  #allocation71 [shape = 's32[]', space=sflag, size = 0x4, offset = 0, fixed_abs, tag = 'sflag constant byte address 0x0 - dummy sync flag']
  #allocation72 [shape = 's32[]', space=sflag, size = 0x4, offset = 0, fixed_abs, tag = 'sflag constant byte address 0x0 - dummy sync flag']
  #allocation73 [shape = 's32[]', space=sflag, size = 0x4, offset = 0, fixed_abs, tag = 'sflag constant byte address 0x0 - dummy sync flag']
  #allocation74 [shape = 's32[]', space=sflag, size = 0x4, offset = 0, fixed_abs, tag = 'sflag constant byte address 0x0 - dummy sync flag']
  #allocation75 [shape = 's32[]', space=sflag, size = 0x4, offset = 0, fixed_abs, tag = 'sflag constant byte address 0x0 - dummy sync flag']
  %s0 = inlined_call_operand.hbm [shape: s32[32], index: 0, kind: input, shape index: {}]
  %s1 = inlined_call_operand.hbm [shape: f32[100,128], index: 1, kind: input, shape index: {}]
  %s2 = inlined_call_operand.hbm [shape: f32[64,128], index: 2, kind: input, shape index: {}]
  %s3 = inlined_call_operand.hbm [shape: f32[16,2,128], index: 3, kind: output, shape index: {}]
  %s4 = sld [smem:[#allocation0]]
  $region177: #{tpu_custom_call.1} parent=0
    _
  %s6 = ssub.s32 1, %s4
  %s7 = scalar_select 0, %s6, %s4
  %9 = dma.hbm_to_smem %s0, 16, [#allocation5], [#allocation4]
  %10 = dma.done [#allocation4], 16
  %11 = sfence
  $region1: #{tpu_custom_call.1} parent=0
    #allocation6 [shape = 'u8[8192]{0}', space=vmem, size = 0x2000, scoped, tag = 'input window, operand 2']
    #allocation7 [shape = 's32[2]{0}', space=sflag, size = 0x8, scoped, tag = 'scoped memory for tpu_custom_call.1']
    #allocation8 [shape = 's32[2]{0}', space=sflag, size = 0x8, scoped, tag = 'scoped memory for tpu_custom_call.1']
    #allocation9 [shape = 'u8[16384]{0}', space=vmem, size = 0x4000, scoped, tag = 'output window, operand 0']
    %12 = vsyncpa [#allocation7], 0
    %s13 = scalar_lea.sflag [#allocation7], 1
    %14 = vsyncpa %s13, 0
    %15 = vsyncpa [#allocation8], 0
    %s16 = scalar_lea.sflag [#allocation8], 1
    %17 = vsyncpa %s16, 0
    loop: start=0, step=1, limit=4
    $region2: #{tpu_custom_call.1} parent=1 // loop_pre_header
      _
    $region3: #{tpu_custom_call.1} parent=1 // loop_header
      %s19 = sphi 0, %s23
      %p20 = scmp.ge.s32.totalorder %s19, 4
      %s29 = sphi 0, %s31
      %s32 = sphi 0, %s29
      %s33 = sphi 0, %s32
      %s49 = sphi 0, %s33
      %s55 = sphi 0, %s57
      %s58 = sphi 0, %s55
      %s59 = sphi 0, %s58
      %s75 = sphi 0, %s59
    $region4: #{tpu_custom_call.1} parent=1 // loop_header_branch
      %22 = sbr.rel (%p20) target = $region8
    $region5: #{tpu_custom_call.1} parent=1 // loop_body
      %s24 = ssub.s32 %s19, 1
      %s25 = ssub.s32 %s19, 2
      %s26 = sadd.s32 %s19, 1
      %s27 = ssub.s32 %s19, %s26
      %p28 = scmp.eq.s32.totalorder %s27, 0
      %s30 = sadd.s32 %s29, 1
      %s31 = scalar_select %p28, %s29, %s30
      %p34 = pneg %p28
      %p35 = scmp.eq.s32.totalorder %s19, 1
      %p36 = por %p34, %p35
      %p37 = scmp.ne.s32.totalorder %s29, %s32
      %p38 = scmp.eq.s32.totalorder %s19, 0
      %p39 = por %p37, %p38
      %p40 = scmp.ne.s32.totalorder %s29, %s32
      %p41 = scmp.eq.s32.totalorder %s24, 1
      %p42 = por %p40, %p41
      %p43 = scmp.ne.s32.totalorder %s32, %s33
      %p44 = scmp.eq.s32.totalorder %s24, 0
      %p45 = por %p43, %p44
      %p46 = scmp.ne.s32.totalorder %s32, %s33
      %p47 = scmp.eq.s32.totalorder %s25, 1
      %p48 = por %p46, %p47
      %p50 = scmp.ne.s32.totalorder %s33, %s49
      %p51 = scmp.eq.s32.totalorder %s25, 0
      %p52 = por %p50, %p51
      %s53 = ssub.s32 %s19, %s26
      %p54 = scmp.eq.s32.totalorder %s53, 0
      %s56 = sadd.s32 %s55, 1
      %s57 = scalar_select %p54, %s55, %s56
      %p60 = pneg %p54
      %p61 = scmp.eq.s32.totalorder %s19, 1
      %p62 = por %p60, %p61
      %p63 = scmp.ne.s32.totalorder %s55, %s58
      %p64 = scmp.eq.s32.totalorder %s19, 0
      %p65 = por %p63, %p64
      %p66 = scmp.ne.s32.totalorder %s55, %s58
      %p67 = scmp.eq.s32.totalorder %s24, 1
      %p68 = por %p66, %p67
      %p69 = scmp.ne.s32.totalorder %s58, %s59
      %p70 = scmp.eq.s32.totalorder %s24, 0
      %p71 = por %p69, %p70
      %p72 = scmp.ne.s32.totalorder %s58, %s59
      %p73 = scmp.eq.s32.totalorder %s25, 1
      %p74 = por %p72, %p73
      %p76 = scmp.ne.s32.totalorder %s59, %s75
      %p77 = scmp.eq.s32.totalorder %s25, 0
      %p78 = por %p76, %p77
      %p79 = scmp.le.s32.totalorder 1, %s19
      %p80 = scmp.lt.s32.totalorder %s19, 3
      %p81 = pnand %p79, %p80
      %p82 = pneg %p81
      // Predicated region
      $region9: #{tpu_custom_call.1} parent=5 // pred_check
        _
      $region10: #{tpu_custom_call.1} parent=5 // pred_check_branch
        %84 = sbr.rel (%p81) target = $region12
      $region11: #{tpu_custom_call.1} parent=5 // pred_region
        %s85 = ssub.s32 %s19, 1
      $region12: #{tpu_custom_call.1} parent=5 // pred_fallthru
        _
      %p86 = scmp.lt.s32.totalorder %s19, 2
      // Predicated region
      $region13: #{tpu_custom_call.1} parent=5 // pred_check
        %p87 = pneg %p86
      $region14: #{tpu_custom_call.1} parent=5 // pred_check_branch
        %89 = sbr.rel (%p87) target = $region16
      $region15: #{tpu_custom_call.1} parent=5 // pred_region
        // Predicated region
        $region17: #{tpu_custom_call.1} parent=15 // pred_check
          %p90 = pneg %p39
        $region18: #{tpu_custom_call.1} parent=15 // pred_check_branch
          %92 = sbr.rel (%p90) target = $region20
        $region19: #{tpu_custom_call.1} parent=15 // pred_region
          %s93 = sand.u32 %s29, 1
          %s94 = scalar_lea.sflag [#allocation7], %s93
          %s95 = sand.u32 %s29, 1
          %s96 = smul.addr %s95, 8
          %s97 = scalar_lea.vmem [#allocation6], %s96
          %s99 = ssub.s32 128, 128
          %100 = vsyncadd %s94, %s99
          %s101 = smul.addr %s19, 128
          %s102 = scalar_lea.hbm %s2, %s101
          %s104 = sshll.u32 %s97, 4
          %s105 = int_to_ptr.vmem [resolvable:$true] %s104
          %107 = dma.hbm_to_vmem [thread:$0]  %s102, 128, %s105, %s94
        $region20: #{tpu_custom_call.1} parent=15 // pred_fallthru
          _
      $region16: #{tpu_custom_call.1} parent=5 // pred_fallthru
        _
      %p108 = scmp.le.s32.totalorder 1, %s19
      %p109 = scmp.lt.s32.totalorder %s19, 3
      %p110 = pnand %p108, %p109
      %p111 = pneg %p110
      // Predicated region
      $region21: #{tpu_custom_call.1} parent=5 // pred_check
        _
      $region22: #{tpu_custom_call.1} parent=5 // pred_check_branch
        %113 = sbr.rel (%p110) target = $region24
      $region23: #{tpu_custom_call.1} parent=5 // pred_region
        %s114 = ssub.s32 %s19, 1
        %s115 = sand.u32 %s32, 1
        %s116 = scalar_lea.sflag [#allocation7], %s115
        %s117 = sand.u32 %s32, 1
        %s118 = smul.addr %s117, 8
        %s119 = scalar_lea.vmem [#allocation6], %s118
        // Predicated region
        $region25: #{tpu_custom_call.1} parent=23 // pred_check
          %p120 = pneg %p45
        $region26: #{tpu_custom_call.1} parent=23 // pred_check_branch
          %122 = sbr.rel (%p120) target = $region28
        $region27: #{tpu_custom_call.1} parent=23 // pred_region
          %123 = dma.done %s116, 128
        $region28: #{tpu_custom_call.1} parent=23 // pred_fallthru
          _
        %s124 = sand.u32 %s32, 1
        %s125 = scalar_lea.sflag [#allocation7], %s124
        %s126 = sand.u32 %s32, 1
        %s127 = smul.addr %s126, 8
        %s128 = scalar_lea.vmem [#allocation6], %s127
        %p129 = pneg %p45
        %p130 = pneg %p42
        %p131 = pneg %p71
        %p132 = pneg %p68
        %s133 = sand.u32 %s58, 1
        %s134 = scalar_lea.sflag [#allocation8], %s133
        %s135 = sand.u32 %s58, 1
        %s136 = smul.addr %s135, 16
        %s137 = scalar_lea.vmem [#allocation9], %s136
        %s138 = smul.u32 8, %s24
        %p139 = scmp.lt.s32.totalorder %s24, 0
        %s140 = ssub.s32 0, %s24
        %s141 = scalar_select %p139, %s140, %s24
        %s142 = sand.u32 %s141, 1
        %s143 = ssub.s32 0, %s142
        %s144 = scalar_select %p139, %s143, %s142
        %p145 = scmp.ne.s32.totalorder %s144, 0
        %p146 = scmp.lt.s32.totalorder %s144, 0
        %p147 = pnand %p146, %p145
        %p148 = pneg %p147
        %s149 = sadd.s32 %s144, 2
        %s150 = scalar_select %p148, %s149, %s144
        %p151 = scmp.eq.s32.totalorder %s24, 0
        // Predicated region
        $region29: #{tpu_custom_call.1} parent=23 // pred_check
          %p152 = pneg %p151
        $region30: #{tpu_custom_call.1} parent=23 // pred_check_branch
          %154 = sbr.rel (%p152) target = $region32
        $region31: #{tpu_custom_call.1} parent=23 // pred_region
          %s155 = sld [smem:[#allocation5]]
          %s156 = smul.addr %s155, 16
          %s157 = scalar_lea.hbm %s1, %s156
          %s158 = smul.u32 %s150, 16
          %s159 = scalar_lea.vmem [#allocation2], %s158
          %s160 = scalar_lea.sflag [#allocation3], %s158
          // Predicated region
          $region33: #{tpu_custom_call.1} parent=31 // pred_check
            _
          $region34: #{tpu_custom_call.1} parent=31 // pred_check_branch
            %162 = sbr.rel target = $region36
          $region35: #{tpu_custom_call.1} parent=31 // pred_region
            %163 = sst [smem:[#allocation12]] [#allocation11]
            %164 = sst [smem:[#allocation13]] [#allocation10]
          $region36: #{tpu_custom_call.1} parent=31 // pred_fallthru
            _
          %166 = shalt.err (0)
          %s168 = sshll.u32 %s159, 4
          %s169 = int_to_ptr.vmem [resolvable:$true] %s168
          %171 = dma.hbm_to_vmem [thread:$0]  %s157, 16, %s169, %s160
          %s172 = sld [smem:[#allocation5 + $0x1]]
          %s173 = smul.addr %s172, 16
          %s174 = scalar_lea.hbm %s1, %s173
          %s175 = sadd.s32 1, %s158
          %s176 = scalar_lea.vmem [#allocation2], %s175
          %s177 = scalar_lea.sflag [#allocation3], %s175
          // Predicated region
          $region37: #{tpu_custom_call.1} parent=31 // pred_check
            _
          $region38: #{tpu_custom_call.1} parent=31 // pred_check_branch
            %179 = sbr.rel target = $region40
          $region39: #{tpu_custom_call.1} parent=31 // pred_region
            %180 = sst [smem:[#allocation12]] [#allocation15]
            %181 = sst [smem:[#allocation13]] [#allocation14]
          $region40: #{tpu_custom_call.1} parent=31 // pred_fallthru
            _
          %183 = shalt.err (0)
          %s185 = sshll.u32 %s176, 4
          %s186 = int_to_ptr.vmem [resolvable:$true] %s185
          %188 = dma.hbm_to_vmem [thread:$0]  %s174, 16, %s186, %s177
          %s189 = sld [smem:[#allocation5 + $0x2]]
          %s190 = smul.addr %s189, 16
          %s191 = scalar_lea.hbm %s1, %s190
          %s192 = sadd.s32 2, %s158
          %s193 = scalar_lea.vmem [#allocation2], %s192
          %s194 = scalar_lea.sflag [#allocation3], %s192
          // Predicated region
          $region41: #{tpu_custom_call.1} parent=31 // pred_check
            _
          $region42: #{tpu_custom_call.1} parent=31 // pred_check_branch
            %196 = sbr.rel target = $region44
          $region43: #{tpu_custom_call.1} parent=31 // pred_region
            %197 = sst [smem:[#allocation12]] [#allocation17]
            %198 = sst [smem:[#allocation13]] [#allocation16]
          $region44: #{tpu_custom_call.1} parent=31 // pred_fallthru
            _
          %200 = shalt.err (0)
          %s202 = sshll.u32 %s193, 4
          %s203 = int_to_ptr.vmem [resolvable:$true] %s202
          %205 = dma.hbm_to_vmem [thread:$0]  %s191, 16, %s203, %s194
          %s206 = sld [smem:[#allocation5 + $0x3]]
          %s207 = smul.addr %s206, 16
          %s208 = scalar_lea.hbm %s1, %s207
          %s209 = sadd.s32 3, %s158
          %s210 = scalar_lea.vmem [#allocation2], %s209
          %s211 = scalar_lea.sflag [#allocation3], %s209
          // Predicated region
          $region45: #{tpu_custom_call.1} parent=31 // pred_check
            _
          $region46: #{tpu_custom_call.1} parent=31 // pred_check_branch
            %213 = sbr.rel target = $region48
          $region47: #{tpu_custom_call.1} parent=31 // pred_region
            %214 = sst [smem:[#allocation12]] [#allocation19]
            %215 = sst [smem:[#allocation13]] [#allocation18]
          $region48: #{tpu_custom_call.1} parent=31 // pred_fallthru
            _
          %217 = shalt.err (0)
          %s219 = sshll.u32 %s210, 4
          %s220 = int_to_ptr.vmem [resolvable:$true] %s219
          %222 = dma.hbm_to_vmem [thread:$0]  %s208, 16, %s220, %s211
          %s223 = sld [smem:[#allocation5 + $0x4]]
          %s224 = smul.addr %s223, 16
          %s225 = scalar_lea.hbm %s1, %s224
          %s226 = sadd.s32 4, %s158
          %s227 = scalar_lea.vmem [#allocation2], %s226
          %s228 = scalar_lea.sflag [#allocation3], %s226
          // Predicated region
          $region49: #{tpu_custom_call.1} parent=31 // pred_check
            _
          $region50: #{tpu_custom_call.1} parent=31 // pred_check_branch
            %230 = sbr.rel target = $region52
          $region51: #{tpu_custom_call.1} parent=31 // pred_region
            %231 = sst [smem:[#allocation12]] [#allocation21]
            %232 = sst [smem:[#allocation13]] [#allocation20]
          $region52: #{tpu_custom_call.1} parent=31 // pred_fallthru
            _
          %234 = shalt.err (0)
          %s236 = sshll.u32 %s227, 4
          %s237 = int_to_ptr.vmem [resolvable:$true] %s236
          %239 = dma.hbm_to_vmem [thread:$0]  %s225, 16, %s237, %s228
          %s240 = sld [smem:[#allocation5 + $0x5]]
          %s241 = smul.addr %s240, 16
          %s242 = scalar_lea.hbm %s1, %s241
          %s243 = sadd.s32 5, %s158
          %s244 = scalar_lea.vmem [#allocation2], %s243
          %s245 = scalar_lea.sflag [#allocation3], %s243
          // Predicated region
          $region53: #{tpu_custom_call.1} parent=31 // pred_check
            _
          $region54: #{tpu_custom_call.1} parent=31 // pred_check_branch
            %247 = sbr.rel target = $region56
          $region55: #{tpu_custom_call.1} parent=31 // pred_region
            %248 = sst [smem:[#allocation12]] [#allocation23]
            %249 = sst [smem:[#allocation13]] [#allocation22]
          $region56: #{tpu_custom_call.1} parent=31 // pred_fallthru
            _
          %251 = shalt.err (0)
          %s253 = sshll.u32 %s244, 4
          %s254 = int_to_ptr.vmem [resolvable:$true] %s253
          %256 = dma.hbm_to_vmem [thread:$0]  %s242, 16, %s254, %s245
          %s257 = sld [smem:[#allocation5 + $0x6]]
          %s258 = smul.addr %s257, 16
          %s259 = scalar_lea.hbm %s1, %s258
          %s260 = sadd.s32 6, %s158
          %s261 = scalar_lea.vmem [#allocation2], %s260
          %s262 = scalar_lea.sflag [#allocation3], %s260
          // Predicated region
          $region57: #{tpu_custom_call.1} parent=31 // pred_check
            _
          $region58: #{tpu_custom_call.1} parent=31 // pred_check_branch
            %264 = sbr.rel target = $region60
          $region59: #{tpu_custom_call.1} parent=31 // pred_region
            %265 = sst [smem:[#allocation12]] [#allocation25]
            %266 = sst [smem:[#allocation13]] [#allocation24]
          $region60: #{tpu_custom_call.1} parent=31 // pred_fallthru
            _
          %268 = shalt.err (0)
          %s270 = sshll.u32 %s261, 4
          %s271 = int_to_ptr.vmem [resolvable:$true] %s270
          %273 = dma.hbm_to_vmem [thread:$0]  %s259, 16, %s271, %s262
          %s274 = sld [smem:[#allocation5 + $0x7]]
          %s275 = smul.addr %s274, 16
          %s276 = scalar_lea.hbm %s1, %s275
          %s277 = sadd.s32 7, %s158
          %s278 = scalar_lea.vmem [#allocation2], %s277
          %s279 = scalar_lea.sflag [#allocation3], %s277
          // Predicated region
          $region61: #{tpu_custom_call.1} parent=31 // pred_check
            _
          $region62: #{tpu_custom_call.1} parent=31 // pred_check_branch
            %281 = sbr.rel target = $region64
          $region63: #{tpu_custom_call.1} parent=31 // pred_region
            %282 = sst [smem:[#allocation12]] [#allocation27]
            %283 = sst [smem:[#allocation13]] [#allocation26]
          $region64: #{tpu_custom_call.1} parent=31 // pred_fallthru
            _
          %285 = shalt.err (0)
          %s287 = sshll.u32 %s278, 4
          %s288 = int_to_ptr.vmem [resolvable:$true] %s287
          %290 = dma.hbm_to_vmem [thread:$0]  %s276, 16, %s288, %s279
          %s291 = sld [smem:[#allocation5 + $0x8]]
          %s292 = smul.addr %s291, 16
          %s293 = scalar_lea.hbm %s1, %s292
          %s294 = sadd.s32 8, %s158
          %s295 = scalar_lea.vmem [#allocation2], %s294
          %s296 = scalar_lea.sflag [#allocation3], %s294
          // Predicated region
          $region65: #{tpu_custom_call.1} parent=31 // pred_check
            _
          $region66: #{tpu_custom_call.1} parent=31 // pred_check_branch
            %298 = sbr.rel target = $region68
          $region67: #{tpu_custom_call.1} parent=31 // pred_region
            %299 = sst [smem:[#allocation12]] [#allocation29]
            %300 = sst [smem:[#allocation13]] [#allocation28]
          $region68: #{tpu_custom_call.1} parent=31 // pred_fallthru
            _
          %302 = shalt.err (0)
          %s304 = sshll.u32 %s295, 4
          %s305 = int_to_ptr.vmem [resolvable:$true] %s304
          %307 = dma.hbm_to_vmem [thread:$0]  %s293, 16, %s305, %s296
          %s308 = sld [smem:[#allocation5 + $0x9]]
          %s309 = smul.addr %s308, 16
          %s310 = scalar_lea.hbm %s1, %s309
          %s311 = sadd.s32 9, %s158
          %s312 = scalar_lea.vmem [#allocation2], %s311
          %s313 = scalar_lea.sflag [#allocation3], %s311
          // Predicated region
          $region69: #{tpu_custom_call.1} parent=31 // pred_check
            _
          $region70: #{tpu_custom_call.1} parent=31 // pred_check_branch
            %315 = sbr.rel target = $region72
          $region71: #{tpu_custom_call.1} parent=31 // pred_region
            %316 = sst [smem:[#allocation12]] [#allocation31]
            %317 = sst [smem:[#allocation13]] [#allocation30]
          $region72: #{tpu_custom_call.1} parent=31 // pred_fallthru
            _
          %319 = shalt.err (0)
          %s321 = sshll.u32 %s312, 4
          %s322 = int_to_ptr.vmem [resolvable:$true] %s321
          %324 = dma.hbm_to_vmem [thread:$0]  %s310, 16, %s322, %s313
          %s325 = sld [smem:[#allocation5 + $0xa]]
          %s326 = smul.addr %s325, 16
          %s327 = scalar_lea.hbm %s1, %s326
          %s328 = sadd.s32 10, %s158
          %s329 = scalar_lea.vmem [#allocation2], %s328
          %s330 = scalar_lea.sflag [#allocation3], %s328
          // Predicated region
          $region73: #{tpu_custom_call.1} parent=31 // pred_check
            _
          $region74: #{tpu_custom_call.1} parent=31 // pred_check_branch
            %332 = sbr.rel target = $region76
          $region75: #{tpu_custom_call.1} parent=31 // pred_region
            %333 = sst [smem:[#allocation12]] [#allocation33]
            %334 = sst [smem:[#allocation13]] [#allocation32]
          $region76: #{tpu_custom_call.1} parent=31 // pred_fallthru
            _
          %336 = shalt.err (0)
          %s338 = sshll.u32 %s329, 4
          %s339 = int_to_ptr.vmem [resolvable:$true] %s338
          %341 = dma.hbm_to_vmem [thread:$0]  %s327, 16, %s339, %s330
          %s342 = sld [smem:[#allocation5 + $0xb]]
          %s343 = smul.addr %s342, 16
          %s344 = scalar_lea.hbm %s1, %s343
          %s345 = sadd.s32 11, %s158
          %s346 = scalar_lea.vmem [#allocation2], %s345
          %s347 = scalar_lea.sflag [#allocation3], %s345
          // Predicated region
          $region77: #{tpu_custom_call.1} parent=31 // pred_check
            _
          $region78: #{tpu_custom_call.1} parent=31 // pred_check_branch
            %349 = sbr.rel target = $region80
          $region79: #{tpu_custom_call.1} parent=31 // pred_region
            %350 = sst [smem:[#allocation12]] [#allocation35]
            %351 = sst [smem:[#allocation13]] [#allocation34]
          $region80: #{tpu_custom_call.1} parent=31 // pred_fallthru
            _
          %353 = shalt.err (0)
          %s355 = sshll.u32 %s346, 4
          %s356 = int_to_ptr.vmem [resolvable:$true] %s355
          %358 = dma.hbm_to_vmem [thread:$0]  %s344, 16, %s356, %s347
          %s359 = sld [smem:[#allocation5 + $0xc]]
          %s360 = smul.addr %s359, 16
          %s361 = scalar_lea.hbm %s1, %s360
          %s362 = sadd.s32 12, %s158
          %s363 = scalar_lea.vmem [#allocation2], %s362
          %s364 = scalar_lea.sflag [#allocation3], %s362
          // Predicated region
          $region81: #{tpu_custom_call.1} parent=31 // pred_check
            _
          $region82: #{tpu_custom_call.1} parent=31 // pred_check_branch
            %366 = sbr.rel target = $region84
          $region83: #{tpu_custom_call.1} parent=31 // pred_region
            %367 = sst [smem:[#allocation12]] [#allocation37]
            %368 = sst [smem:[#allocation13]] [#allocation36]
          $region84: #{tpu_custom_call.1} parent=31 // pred_fallthru
            _
          %370 = shalt.err (0)
          %s372 = sshll.u32 %s363, 4
          %s373 = int_to_ptr.vmem [resolvable:$true] %s372
          %375 = dma.hbm_to_vmem [thread:$0]  %s361, 16, %s373, %s364
          %s376 = sld [smem:[#allocation5 + $0xd]]
          %s377 = smul.addr %s376, 16
          %s378 = scalar_lea.hbm %s1, %s377
          %s379 = sadd.s32 13, %s158
          %s380 = scalar_lea.vmem [#allocation2], %s379
          %s381 = scalar_lea.sflag [#allocation3], %s379
          // Predicated region
          $region85: #{tpu_custom_call.1} parent=31 // pred_check
            _
          $region86: #{tpu_custom_call.1} parent=31 // pred_check_branch
            %383 = sbr.rel target = $region88
          $region87: #{tpu_custom_call.1} parent=31 // pred_region
            %384 = sst [smem:[#allocation12]] [#allocation39]
            %385 = sst [smem:[#allocation13]] [#allocation38]
          $region88: #{tpu_custom_call.1} parent=31 // pred_fallthru
            _
          %387 = shalt.err (0)
          %s389 = sshll.u32 %s380, 4
          %s390 = int_to_ptr.vmem [resolvable:$true] %s389
          %392 = dma.hbm_to_vmem [thread:$0]  %s378, 16, %s390, %s381
          %s393 = sld [smem:[#allocation5 + $0xe]]
          %s394 = smul.addr %s393, 16
          %s395 = scalar_lea.hbm %s1, %s394
          %s396 = sadd.s32 14, %s158
          %s397 = scalar_lea.vmem [#allocation2], %s396
          %s398 = scalar_lea.sflag [#allocation3], %s396
          // Predicated region
          $region89: #{tpu_custom_call.1} parent=31 // pred_check
            _
          $region90: #{tpu_custom_call.1} parent=31 // pred_check_branch
            %400 = sbr.rel target = $region92
          $region91: #{tpu_custom_call.1} parent=31 // pred_region
            %401 = sst [smem:[#allocation12]] [#allocation41]
            %402 = sst [smem:[#allocation13]] [#allocation40]
          $region92: #{tpu_custom_call.1} parent=31 // pred_fallthru
            _
          %404 = shalt.err (0)
          %s406 = sshll.u32 %s397, 4
          %s407 = int_to_ptr.vmem [resolvable:$true] %s406
          %409 = dma.hbm_to_vmem [thread:$0]  %s395, 16, %s407, %s398
          %s410 = sld [smem:[#allocation5 + $0xf]]
          %s411 = smul.addr %s410, 16
          %s412 = scalar_lea.hbm %s1, %s411
          %s413 = sadd.s32 15, %s158
          %s414 = scalar_lea.vmem [#allocation2], %s413
          %s415 = scalar_lea.sflag [#allocation3], %s413
          // Predicated region
          $region93: #{tpu_custom_call.1} parent=31 // pred_check
            _
          $region94: #{tpu_custom_call.1} parent=31 // pred_check_branch
            %417 = sbr.rel target = $region96
          $region95: #{tpu_custom_call.1} parent=31 // pred_region
            %418 = sst [smem:[#allocation12]] [#allocation43]
            %419 = sst [smem:[#allocation13]] [#allocation42]
          $region96: #{tpu_custom_call.1} parent=31 // pred_fallthru
            _
          %421 = shalt.err (0)
          %s423 = sshll.u32 %s414, 4
          %s424 = int_to_ptr.vmem [resolvable:$true] %s423
          %426 = dma.hbm_to_vmem [thread:$0]  %s412, 16, %s424, %s415
        $region32: #{tpu_custom_call.1} parent=23 // pred_fallthru
          _
        %s427 = sadd.s32 %s24, 1
        %p428 = scmp.lt.s32.totalorder %s427, 2
        // Predicated region
        $region97: #{tpu_custom_call.1} parent=23 // pred_check
          %p429 = pneg %p428
        $region98: #{tpu_custom_call.1} parent=23 // pred_check_branch
          %431 = sbr.rel (%p429) target = $region100
        $region99: #{tpu_custom_call.1} parent=23 // pred_region
          %s432 = ssub.s32 1, %s150
          %s433 = smul.u32 %s427, 16
          %s434 = sld [smem:[#allocation5 + %s433]]
          %s435 = smul.addr %s434, 16
          %s436 = scalar_lea.hbm %s1, %s435
          %s437 = smul.u32 %s432, 16
          %s438 = scalar_lea.vmem [#allocation2], %s437
          %s439 = scalar_lea.sflag [#allocation3], %s437
          // Predicated region
          $region101: #{tpu_custom_call.1} parent=99 // pred_check
            _
          $region102: #{tpu_custom_call.1} parent=99 // pred_check_branch
            %441 = sbr.rel target = $region104
          $region103: #{tpu_custom_call.1} parent=99 // pred_region
            %442 = sst [smem:[#allocation12]] [#allocation45]
            %443 = sst [smem:[#allocation13]] [#allocation44]
          $region104: #{tpu_custom_call.1} parent=99 // pred_fallthru
            _
          %445 = shalt.err (0)
          %s447 = sshll.u32 %s438, 4
          %s448 = int_to_ptr.vmem [resolvable:$true] %s447
          %450 = dma.hbm_to_vmem [thread:$0]  %s436, 16, %s448, %s439
          %s451 = sadd.s32 %s433, 1
          %s452 = sld [smem:[#allocation5 + %s451]]
          %s453 = smul.addr %s452, 16
          %s454 = scalar_lea.hbm %s1, %s453
          %s455 = sadd.s32 1, %s437
          %s456 = scalar_lea.vmem [#allocation2], %s455
          %s457 = scalar_lea.sflag [#allocation3], %s455
          // Predicated region
          $region105: #{tpu_custom_call.1} parent=99 // pred_check
            _
          $region106: #{tpu_custom_call.1} parent=99 // pred_check_branch
            %459 = sbr.rel target = $region108
          $region107: #{tpu_custom_call.1} parent=99 // pred_region
            %460 = sst [smem:[#allocation12]] [#allocation47]
            %461 = sst [smem:[#allocation13]] [#allocation46]
          $region108: #{tpu_custom_call.1} parent=99 // pred_fallthru
            _
          %463 = shalt.err (0)
          %s465 = sshll.u32 %s456, 4
          %s466 = int_to_ptr.vmem [resolvable:$true] %s465
          %468 = dma.hbm_to_vmem [thread:$0]  %s454, 16, %s466, %s457
          %s469 = sadd.s32 %s433, 2
          %s470 = sld [smem:[#allocation5 + %s469]]
          %s471 = smul.addr %s470, 16
          %s472 = scalar_lea.hbm %s1, %s471
          %s473 = sadd.s32 2, %s437
          %s474 = scalar_lea.vmem [#allocation2], %s473
          %s475 = scalar_lea.sflag [#allocation3], %s473
          // Predicated region
          $region109: #{tpu_custom_call.1} parent=99 // pred_check
            _
          $region110: #{tpu_custom_call.1} parent=99 // pred_check_branch
            %477 = sbr.rel target = $region112
          $region111: #{tpu_custom_call.1} parent=99 // pred_region
            %478 = sst [smem:[#allocation12]] [#allocation49]
            %479 = sst [smem:[#allocation13]] [#allocation48]
          $region112: #{tpu_custom_call.1} parent=99 // pred_fallthru
            _
          %481 = shalt.err (0)
          %s483 = sshll.u32 %s474, 4
          %s484 = int_to_ptr.vmem [resolvable:$true] %s483
          %486 = dma.hbm_to_vmem [thread:$0]  %s472, 16, %s484, %s475
          %s487 = sadd.s32 %s433, 3
          %s488 = sld [smem:[#allocation5 + %s487]]
          %s489 = smul.addr %s488, 16
          %s490 = scalar_lea.hbm %s1, %s489
          %s491 = sadd.s32 3, %s437
          %s492 = scalar_lea.vmem [#allocation2], %s491
          %s493 = scalar_lea.sflag [#allocation3], %s491
          // Predicated region
          $region113: #{tpu_custom_call.1} parent=99 // pred_check
            _
          $region114: #{tpu_custom_call.1} parent=99 // pred_check_branch
            %495 = sbr.rel target = $region116
          $region115: #{tpu_custom_call.1} parent=99 // pred_region
            %496 = sst [smem:[#allocation12]] [#allocation51]
            %497 = sst [smem:[#allocation13]] [#allocation50]
          $region116: #{tpu_custom_call.1} parent=99 // pred_fallthru
            _
          %499 = shalt.err (0)
          %s501 = sshll.u32 %s492, 4
          %s502 = int_to_ptr.vmem [resolvable:$true] %s501
          %504 = dma.hbm_to_vmem [thread:$0]  %s490, 16, %s502, %s493
          %s505 = sadd.s32 %s433, 4
          %s506 = sld [smem:[#allocation5 + %s505]]
          %s507 = smul.addr %s506, 16
          %s508 = scalar_lea.hbm %s1, %s507
          %s509 = sadd.s32 4, %s437
          %s510 = scalar_lea.vmem [#allocation2], %s509
          %s511 = scalar_lea.sflag [#allocation3], %s509
          // Predicated region
          $region117: #{tpu_custom_call.1} parent=99 // pred_check
            _
          $region118: #{tpu_custom_call.1} parent=99 // pred_check_branch
            %513 = sbr.rel target = $region120
          $region119: #{tpu_custom_call.1} parent=99 // pred_region
            %514 = sst [smem:[#allocation12]] [#allocation53]
            %515 = sst [smem:[#allocation13]] [#allocation52]
          $region120: #{tpu_custom_call.1} parent=99 // pred_fallthru
            _
          %517 = shalt.err (0)
          %s519 = sshll.u32 %s510, 4
          %s520 = int_to_ptr.vmem [resolvable:$true] %s519
          %522 = dma.hbm_to_vmem [thread:$0]  %s508, 16, %s520, %s511
          %s523 = sadd.s32 %s433, 5
          %s524 = sld [smem:[#allocation5 + %s523]]
          %s525 = smul.addr %s524, 16
          %s526 = scalar_lea.hbm %s1, %s525
          %s527 = sadd.s32 5, %s437
          %s528 = scalar_lea.vmem [#allocation2], %s527
          %s529 = scalar_lea.sflag [#allocation3], %s527
          // Predicated region
          $region121: #{tpu_custom_call.1} parent=99 // pred_check
            _
          $region122: #{tpu_custom_call.1} parent=99 // pred_check_branch
            %531 = sbr.rel target = $region124
          $region123: #{tpu_custom_call.1} parent=99 // pred_region
            %532 = sst [smem:[#allocation12]] [#allocation55]
            %533 = sst [smem:[#allocation13]] [#allocation54]
          $region124: #{tpu_custom_call.1} parent=99 // pred_fallthru
            _
          %535 = shalt.err (0)
          %s537 = sshll.u32 %s528, 4
          %s538 = int_to_ptr.vmem [resolvable:$true] %s537
          %540 = dma.hbm_to_vmem [thread:$0]  %s526, 16, %s538, %s529
          %s541 = sadd.s32 %s433, 6
          %s542 = sld [smem:[#allocation5 + %s541]]
          %s543 = smul.addr %s542, 16
          %s544 = scalar_lea.hbm %s1, %s543
          %s545 = sadd.s32 6, %s437
          %s546 = scalar_lea.vmem [#allocation2], %s545
          %s547 = scalar_lea.sflag [#allocation3], %s545
          // Predicated region
          $region125: #{tpu_custom_call.1} parent=99 // pred_check
            _
          $region126: #{tpu_custom_call.1} parent=99 // pred_check_branch
            %549 = sbr.rel target = $region128
          $region127: #{tpu_custom_call.1} parent=99 // pred_region
            %550 = sst [smem:[#allocation12]] [#allocation57]
            %551 = sst [smem:[#allocation13]] [#allocation56]
          $region128: #{tpu_custom_call.1} parent=99 // pred_fallthru
            _
          %553 = shalt.err (0)
          %s555 = sshll.u32 %s546, 4
          %s556 = int_to_ptr.vmem [resolvable:$true] %s555
          %558 = dma.hbm_to_vmem [thread:$0]  %s544, 16, %s556, %s547
          %s559 = sadd.s32 %s433, 7
          %s560 = sld [smem:[#allocation5 + %s559]]
          %s561 = smul.addr %s560, 16
          %s562 = scalar_lea.hbm %s1, %s561
          %s563 = sadd.s32 7, %s437
          %s564 = scalar_lea.vmem [#allocation2], %s563
          %s565 = scalar_lea.sflag [#allocation3], %s563
          // Predicated region
          $region129: #{tpu_custom_call.1} parent=99 // pred_check
            _
          $region130: #{tpu_custom_call.1} parent=99 // pred_check_branch
            %567 = sbr.rel target = $region132
          $region131: #{tpu_custom_call.1} parent=99 // pred_region
            %568 = sst [smem:[#allocation12]] [#allocation59]
            %569 = sst [smem:[#allocation13]] [#allocation58]
          $region132: #{tpu_custom_call.1} parent=99 // pred_fallthru
            _
          %571 = shalt.err (0)
          %s573 = sshll.u32 %s564, 4
          %s574 = int_to_ptr.vmem [resolvable:$true] %s573
          %576 = dma.hbm_to_vmem [thread:$0]  %s562, 16, %s574, %s565
          %s577 = sadd.s32 %s433, 8
          %s578 = sld [smem:[#allocation5 + %s577]]
          %s579 = smul.addr %s578, 16
          %s580 = scalar_lea.hbm %s1, %s579
          %s581 = sadd.s32 8, %s437
          %s582 = scalar_lea.vmem [#allocation2], %s581
          %s583 = scalar_lea.sflag [#allocation3], %s581
          // Predicated region
          $region133: #{tpu_custom_call.1} parent=99 // pred_check
            _
          $region134: #{tpu_custom_call.1} parent=99 // pred_check_branch
            %585 = sbr.rel target = $region136
          $region135: #{tpu_custom_call.1} parent=99 // pred_region
            %586 = sst [smem:[#allocation12]] [#allocation61]
            %587 = sst [smem:[#allocation13]] [#allocation60]
          $region136: #{tpu_custom_call.1} parent=99 // pred_fallthru
            _
          %589 = shalt.err (0)
          %s591 = sshll.u32 %s582, 4
          %s592 = int_to_ptr.vmem [resolvable:$true] %s591
          %594 = dma.hbm_to_vmem [thread:$0]  %s580, 16, %s592, %s583
          %s595 = sadd.s32 %s433, 9
          %s596 = sld [smem:[#allocation5 + %s595]]
          %s597 = smul.addr %s596, 16
          %s598 = scalar_lea.hbm %s1, %s597
          %s599 = sadd.s32 9, %s437
          %s600 = scalar_lea.vmem [#allocation2], %s599
          %s601 = scalar_lea.sflag [#allocation3], %s599
          // Predicated region
          $region137: #{tpu_custom_call.1} parent=99 // pred_check
            _
          $region138: #{tpu_custom_call.1} parent=99 // pred_check_branch
            %603 = sbr.rel target = $region140
          $region139: #{tpu_custom_call.1} parent=99 // pred_region
            %604 = sst [smem:[#allocation12]] [#allocation63]
            %605 = sst [smem:[#allocation13]] [#allocation62]
          $region140: #{tpu_custom_call.1} parent=99 // pred_fallthru
            _
          %607 = shalt.err (0)
          %s609 = sshll.u32 %s600, 4
          %s610 = int_to_ptr.vmem [resolvable:$true] %s609
          %612 = dma.hbm_to_vmem [thread:$0]  %s598, 16, %s610, %s601
          %s613 = sadd.s32 %s433, 10
          %s614 = sld [smem:[#allocation5 + %s613]]
          %s615 = smul.addr %s614, 16
          %s616 = scalar_lea.hbm %s1, %s615
          %s617 = sadd.s32 10, %s437
          %s618 = scalar_lea.vmem [#allocation2], %s617
          %s619 = scalar_lea.sflag [#allocation3], %s617
          // Predicated region
          $region141: #{tpu_custom_call.1} parent=99 // pred_check
            _
          $region142: #{tpu_custom_call.1} parent=99 // pred_check_branch
            %621 = sbr.rel target = $region144
          $region143: #{tpu_custom_call.1} parent=99 // pred_region
            %622 = sst [smem:[#allocation12]] [#allocation65]
            %623 = sst [smem:[#allocation13]] [#allocation64]
          $region144: #{tpu_custom_call.1} parent=99 // pred_fallthru
            _
          %625 = shalt.err (0)
          %s627 = sshll.u32 %s618, 4
          %s628 = int_to_ptr.vmem [resolvable:$true] %s627
          %630 = dma.hbm_to_vmem [thread:$0]  %s616, 16, %s628, %s619
          %s631 = sadd.s32 %s433, 11
          %s632 = sld [smem:[#allocation5 + %s631]]
          %s633 = smul.addr %s632, 16
          %s634 = scalar_lea.hbm %s1, %s633
          %s635 = sadd.s32 11, %s437
          %s636 = scalar_lea.vmem [#allocation2], %s635
          %s637 = scalar_lea.sflag [#allocation3], %s635
          // Predicated region
          $region145: #{tpu_custom_call.1} parent=99 // pred_check
            _
          $region146: #{tpu_custom_call.1} parent=99 // pred_check_branch
            %639 = sbr.rel target = $region148
          $region147: #{tpu_custom_call.1} parent=99 // pred_region
            %640 = sst [smem:[#allocation12]] [#allocation67]
            %641 = sst [smem:[#allocation13]] [#allocation66]
          $region148: #{tpu_custom_call.1} parent=99 // pred_fallthru
            _
          %643 = shalt.err (0)
          %s645 = sshll.u32 %s636, 4
          %s646 = int_to_ptr.vmem [resolvable:$true] %s645
          %648 = dma.hbm_to_vmem [thread:$0]  %s634, 16, %s646, %s637
          %s649 = sadd.s32 %s433, 12
          %s650 = sld [smem:[#allocation5 + %s649]]
          %s651 = smul.addr %s650, 16
          %s652 = scalar_lea.hbm %s1, %s651
          %s653 = sadd.s32 12, %s437
          %s654 = scalar_lea.vmem [#allocation2], %s653
          %s655 = scalar_lea.sflag [#allocation3], %s653
          // Predicated region
          $region149: #{tpu_custom_call.1} parent=99 // pred_check
            _
          $region150: #{tpu_custom_call.1} parent=99 // pred_check_branch
            %657 = sbr.rel target = $region152
          $region151: #{tpu_custom_call.1} parent=99 // pred_region
            %658 = sst [smem:[#allocation12]] [#allocation69]
            %659 = sst [smem:[#allocation13]] [#allocation68]
          $region152: #{tpu_custom_call.1} parent=99 // pred_fallthru
            _
          %661 = shalt.err (0)
          %s663 = sshll.u32 %s654, 4
          %s664 = int_to_ptr.vmem [resolvable:$true] %s663
          %666 = dma.hbm_to_vmem [thread:$0]  %s652, 16, %s664, %s655
          %s667 = sadd.s32 %s433, 13
          %s668 = sld [smem:[#allocation5 + %s667]]
          %s669 = smul.addr %s668, 16
          %s670 = scalar_lea.hbm %s1, %s669
          %s671 = sadd.s32 13, %s437
          %s672 = scalar_lea.vmem [#allocation2], %s671
          %s673 = scalar_lea.sflag [#allocation3], %s671
          // Predicated region
          $region153: #{tpu_custom_call.1} parent=99 // pred_check
            _
          $region154: #{tpu_custom_call.1} parent=99 // pred_check_branch
            %675 = sbr.rel target = $region156
          $region155: #{tpu_custom_call.1} parent=99 // pred_region
            %676 = sst [smem:[#allocation12]] [#allocation71]
            %677 = sst [smem:[#allocation13]] [#allocation70]
          $region156: #{tpu_custom_call.1} parent=99 // pred_fallthru
            _
          %679 = shalt.err (0)
          %s681 = sshll.u32 %s672, 4
          %s682 = int_to_ptr.vmem [resolvable:$true] %s681
          %684 = dma.hbm_to_vmem [thread:$0]  %s670, 16, %s682, %s673
          %s685 = sadd.s32 %s433, 14
          %s686 = sld [smem:[#allocation5 + %s685]]
          %s687 = smul.addr %s686, 16
          %s688 = scalar_lea.hbm %s1, %s687
          %s689 = sadd.s32 14, %s437
          %s690 = scalar_lea.vmem [#allocation2], %s689
          %s691 = scalar_lea.sflag [#allocation3], %s689
          // Predicated region
          $region157: #{tpu_custom_call.1} parent=99 // pred_check
            _
          $region158: #{tpu_custom_call.1} parent=99 // pred_check_branch
            %693 = sbr.rel target = $region160
          $region159: #{tpu_custom_call.1} parent=99 // pred_region
            %694 = sst [smem:[#allocation12]] [#allocation73]
            %695 = sst [smem:[#allocation13]] [#allocation72]
          $region160: #{tpu_custom_call.1} parent=99 // pred_fallthru
            _
          %697 = shalt.err (0)
          %s699 = sshll.u32 %s690, 4
          %s700 = int_to_ptr.vmem [resolvable:$true] %s699
          %702 = dma.hbm_to_vmem [thread:$0]  %s688, 16, %s700, %s691
          %s703 = sadd.s32 %s433, 15
          %s704 = sld [smem:[#allocation5 + %s703]]
          %s705 = smul.addr %s704, 16
          %s706 = scalar_lea.hbm %s1, %s705
          %s707 = sadd.s32 15, %s437
          %s708 = scalar_lea.vmem [#allocation2], %s707
          %s709 = scalar_lea.sflag [#allocation3], %s707
          // Predicated region
          $region161: #{tpu_custom_call.1} parent=99 // pred_check
            _
          $region162: #{tpu_custom_call.1} parent=99 // pred_check_branch
            %711 = sbr.rel target = $region164
          $region163: #{tpu_custom_call.1} parent=99 // pred_region
            %712 = sst [smem:[#allocation12]] [#allocation75]
            %713 = sst [smem:[#allocation13]] [#allocation74]
          $region164: #{tpu_custom_call.1} parent=99 // pred_fallthru
            _
          %715 = shalt.err (0)
          %s717 = sshll.u32 %s708, 4
          %s718 = int_to_ptr.vmem [resolvable:$true] %s717
          %720 = dma.hbm_to_vmem [thread:$0]  %s706, 16, %s718, %s709
        $region100: #{tpu_custom_call.1} parent=23 // pred_fallthru
          _
        %s721 = smul.u32 %s150, 16
        %s722 = scalar_lea.sflag [#allocation3], %s721
        %724 = dma.done %s722, 16
        %s725 = sadd.s32 1, %s721
        %s726 = scalar_lea.sflag [#allocation3], %s725
        %728 = dma.done %s726, 16
        %s729 = sadd.s32 2, %s721
        %s730 = scalar_lea.sflag [#allocation3], %s729
        %732 = dma.done %s730, 16
        %s733 = sadd.s32 3, %s721
        %s734 = scalar_lea.sflag [#allocation3], %s733
        %736 = dma.done %s734, 16
        %s737 = sadd.s32 4, %s721
        %s738 = scalar_lea.sflag [#allocation3], %s737
        %740 = dma.done %s738, 16
        %s741 = sadd.s32 5, %s721
        %s742 = scalar_lea.sflag [#allocation3], %s741
        %744 = dma.done %s742, 16
        %s745 = sadd.s32 6, %s721
        %s746 = scalar_lea.sflag [#allocation3], %s745
        %748 = dma.done %s746, 16
        %s749 = sadd.s32 7, %s721
        %s750 = scalar_lea.sflag [#allocation3], %s749
        %752 = dma.done %s750, 16
        %s753 = sadd.s32 8, %s721
        %s754 = scalar_lea.sflag [#allocation3], %s753
        %756 = dma.done %s754, 16
        %s757 = sadd.s32 9, %s721
        %s758 = scalar_lea.sflag [#allocation3], %s757
        %760 = dma.done %s758, 16
        %s761 = sadd.s32 10, %s721
        %s762 = scalar_lea.sflag [#allocation3], %s761
        %764 = dma.done %s762, 16
        %s765 = sadd.s32 11, %s721
        %s766 = scalar_lea.sflag [#allocation3], %s765
        %768 = dma.done %s766, 16
        %s769 = sadd.s32 12, %s721
        %s770 = scalar_lea.sflag [#allocation3], %s769
        %772 = dma.done %s770, 16
        %s773 = sadd.s32 13, %s721
        %s774 = scalar_lea.sflag [#allocation3], %s773
        %776 = dma.done %s774, 16
        %s777 = sadd.s32 14, %s721
        %s778 = scalar_lea.sflag [#allocation3], %s777
        %780 = dma.done %s778, 16
        %s781 = sadd.s32 15, %s721
        %s782 = scalar_lea.sflag [#allocation3], %s781
        %784 = dma.done %s782, 16
        %s785 = scalar_lea.vmem [#allocation2], %s721
        %v786 = vld [vmem:[%s785] sm:$0x3]
        %v787 = vld [vmem:[%s785 + $0x2] sm:$0x3]
        %v788 = vld [vmem:[%s785 + $0x4] sm:$0x3]
        %v789 = vld [vmem:[%s785 + $0x6] sm:$0x3]
        %v790 = vld [vmem:[%s785 + $0x8] sm:$0x3]
        %v791 = vld [vmem:[%s785 + $0xa] sm:$0x3]
        %v792 = vld [vmem:[%s785 + $0xc] sm:$0x3]
        %v793 = vld [vmem:[%s785 + $0xe] sm:$0x3]
        %v794 = vld [vmem:[%s119] sm:$0xff]
        %v795 = vmul.f32 %v786, 11.313708
        %v796 = vmul.f32 %v787, 11.313708
        %v797 = vmul.f32 %v788, 11.313708
        %v798 = vmul.f32 %v789, 11.313708
        %v799 = vmul.f32 %v790, 11.313708
        %v800 = vmul.f32 %v791, 11.313708
        %v801 = vmul.f32 %v792, 11.313708
        %v802 = vmul.f32 %v793, 11.313708
        %v804 = vcombine.high %v794, %v794
        %v806 = vunpack.c.l.s4 1966171168
        %v807 = vunpack.c.0.s8 %v806
        %v808 = vlaneseq
        %v809 = vshrl.u32 %v808, 7
        %v810 = vsub.s32 %v807, %v809
        %v811 = vrot.slane %v794, %v810
        %v813 = vunpack.c.l.s4 1966171168
        %v814 = vunpack.c.0.s8 %v813
        %v815 = vlaneseq
        %v816 = vshrl.u32 %v815, 7
        %v817 = vsub.s32 %v814, %v816
        %v818 = vrot.slane %v804, %v817
        %v819 = vcombine.high %v811, %v811
        %v820 = vcombine.high %v818, %v818
        %v822 = vunpack.c.l.s4 1966171168
        %v823 = vunpack.c.0.s8 %v822
        %v824 = vlaneseq
        %v825 = vshrl.u32 %v824, 7
        %v826 = vsub.s32 %v823, %v825
        %v827 = vrot.slane %v811, %v826
        %v829 = vunpack.c.l.s4 1966171168
        %v830 = vunpack.c.0.s8 %v829
        %v831 = vlaneseq
        %v832 = vshrl.u32 %v831, 7
        %v833 = vsub.s32 %v830, %v832
        %v834 = vrot.slane %v818, %v833
        %v836 = vunpack.c.l.s4 1966171168
        %v837 = vunpack.c.0.s8 %v836
        %v838 = vlaneseq
        %v839 = vshrl.u32 %v838, 7
        %v840 = vsub.s32 %v837, %v839
        %v841 = vrot.slane %v819, %v840
        %v843 = vunpack.c.l.s4 1966171168
        %v844 = vunpack.c.0.s8 %v843
        %v845 = vlaneseq
        %v846 = vshrl.u32 %v845, 7
        %v847 = vsub.s32 %v844, %v846
        %v848 = vrot.slane %v820, %v847
        %v849 = vcombine.high %v827, %v827
        %v850 = vcombine.high %v834, %v834
        %v851 = vcombine.high %v841, %v841
        %v852 = vcombine.high %v848, %v848
        %v853 = vlaneseq
        %v854 = vshrl.u32 %v853, 7
        %v855 = vsub.s32 0, %v854
        %v856 = vrot.slane %v827, %v855
        %v857 = vlaneseq
        %v858 = vshrl.u32 %v857, 7
        %v859 = vsub.s32 0, %v858
        %v860 = vrot.slane %v841, %v859
        %v861 = vlaneseq
        %v862 = vshrl.u32 %v861, 7
        %v863 = vsub.s32 0, %v862
        %v864 = vrot.slane %v849, %v863
        %v865 = vlaneseq
        %v866 = vshrl.u32 %v865, 7
        %v867 = vsub.s32 0, %v866
        %v868 = vrot.slane %v851, %v867
        %v869 = vlaneseq
        %v870 = vshrl.u32 %v869, 7
        %v871 = vsub.s32 0, %v870
        %v872 = vrot.slane %v834, %v871
        %v873 = vlaneseq
        %v874 = vshrl.u32 %v873, 7
        %v875 = vsub.s32 0, %v874
        %v876 = vrot.slane %v848, %v875
        %v877 = vlaneseq
        %v878 = vshrl.u32 %v877, 7
        %v879 = vsub.s32 0, %v878
        %v880 = vrot.slane %v850, %v879
        %v881 = vlaneseq
        %v882 = vshrl.u32 %v881, 7
        %v883 = vsub.s32 0, %v882
        %v884 = vrot.slane %v852, %v883
        %v893 = vadd.f32 %v795, %v856
        %v894 = vadd.f32 %v796, %v860
        %v895 = vadd.f32 %v797, %v864
        %v896 = vadd.f32 %v798, %v868
        %v897 = vadd.f32 %v799, %v872
        %v898 = vadd.f32 %v800, %v876
        %v899 = vadd.f32 %v801, %v880
        %v900 = vadd.f32 %v802, %v884
        %901 = vst [vmem:[%s137] sm:$0x3] %v893
        %902 = vst [vmem:[%s137 + $0x2] sm:$0x3] %v894
        %903 = vst [vmem:[%s137 + $0x4] sm:$0x3] %v895
        %904 = vst [vmem:[%s137 + $0x6] sm:$0x3] %v896
        %905 = vst [vmem:[%s137 + $0x8] sm:$0x3] %v897
        %906 = vst [vmem:[%s137 + $0xa] sm:$0x3] %v898
        %907 = vst [vmem:[%s137 + $0xc] sm:$0x3] %v899
        %908 = vst [vmem:[%s137 + $0xe] sm:$0x3] %v900
        %s909 = sand.u32 %s58, 1
        %s910 = scalar_lea.sflag [#allocation8], %s909
        %s911 = sand.u32 %s58, 1
        %s912 = smul.addr %s911, 16
        %s913 = scalar_lea.vmem [#allocation9], %s912
        // Predicated region
        $region165: #{tpu_custom_call.1} parent=23 // pred_check
          %p914 = pneg %p68
        $region166: #{tpu_custom_call.1} parent=23 // pred_check_branch
          %916 = sbr.rel (%p914) target = $region168
        $region167: #{tpu_custom_call.1} parent=23 // pred_region
          %s917 = smul.u32 8, %s24
          %s919 = ssub.s32 256, 256
          %920 = vsyncadd %s910, %s919
          %s921 = smul.addr %s917, 32
          %s922 = scalar_lea.hbm %s3, %s921
          %s923 = sshll.u32 %s913, 4
          %s924 = int_to_ptr.vmem [resolvable:$true] %s923
          %929 = dma.vmem_to_hbm [thread:$0]  %s924, 256, %s922, %s910, 32, 32, 2
        $region168: #{tpu_custom_call.1} parent=23 // pred_fallthru
          _
      $region24: #{tpu_custom_call.1} parent=5 // pred_fallthru
        _
      %p930 = scmp.le.s32.totalorder 2, %s19
      // Predicated region
      $region169: #{tpu_custom_call.1} parent=5 // pred_check
        %p931 = pneg %p930
      $region170: #{tpu_custom_call.1} parent=5 // pred_check_branch
        %933 = sbr.rel (%p931) target = $region172
      $region171: #{tpu_custom_call.1} parent=5 // pred_region
        %s934 = ssub.s32 %s19, 2
        // Predicated region
        $region173: #{tpu_custom_call.1} parent=171 // pred_check
          %p935 = pneg %p74
        $region174: #{tpu_custom_call.1} parent=171 // pred_check_branch
          %937 = sbr.rel (%p935) target = $region176
        $region175: #{tpu_custom_call.1} parent=171 // pred_region
          %s938 = sand.u32 %s59, 1
          %s939 = scalar_lea.sflag [#allocation8], %s938
          %s940 = sand.u32 %s59, 1
          %s941 = smul.addr %s940, 16
          %s942 = scalar_lea.vmem [#allocation9], %s941
          %943 = dma.done %s939, 256
        $region176: #{tpu_custom_call.1} parent=171 // pred_fallthru
          _
      $region172: #{tpu_custom_call.1} parent=5 // pred_fallthru
        _
    $region6: #{tpu_custom_call.1} parent=1 // loop_footer
      %s23 = sadd.s32 1, %s19
    $region7: #{tpu_custom_call.1} parent=1 // loop_footer_branch
      %18 = sbr.rel target = $region3
    $region8: #{tpu_custom_call.1} parent=1 // loop_exit
      _
    %944 = vsyncpa [#allocation7], 1
    %s945 = scalar_lea.sflag [#allocation7], 1
    %946 = vsyncpa %s945, 1
    %947 = vsyncpa [#allocation8], 1
    %s948 = scalar_lea.sflag [#allocation8], 1
    %949 = vsyncpa %s948, 1
  %950 = vsyncmov [#allocation3]
  %s951 = vpop.sfrf %950
  %p952 = scmp.eq.s32.totalorder %s951, 0
  %p953 = pneg %p952
  %955 = shalt.err (%p953)
  %s956 = scalar_lea.sflag [#allocation3], 1
  %957 = vsyncmov %s956
  %s958 = vpop.sfrf %957
  %p959 = scmp.eq.s32.totalorder %s958, 0
  %p960 = pneg %p959
  %962 = shalt.err (%p960)
  %s963 = scalar_lea.sflag [#allocation3], 2
  %964 = vsyncmov %s963
  %s965 = vpop.sfrf %964
  %p966 = scmp.eq.s32.totalorder %s965, 0
  %p967 = pneg %p966
  %969 = shalt.err (%p967)
  %s970 = scalar_lea.sflag [#allocation3], 3
  %971 = vsyncmov %s970
  %s972 = vpop.sfrf %971
  %p973 = scmp.eq.s32.totalorder %s972, 0
  %p974 = pneg %p973
  %976 = shalt.err (%p974)
  %s977 = scalar_lea.sflag [#allocation3], 4
  %978 = vsyncmov %s977
  %s979 = vpop.sfrf %978
  %p980 = scmp.eq.s32.totalorder %s979, 0
  %p981 = pneg %p980
  %983 = shalt.err (%p981)
  %s984 = scalar_lea.sflag [#allocation3], 5
  %985 = vsyncmov %s984
  %s986 = vpop.sfrf %985
  %p987 = scmp.eq.s32.totalorder %s986, 0
  %p988 = pneg %p987
  %990 = shalt.err (%p988)
  %s991 = scalar_lea.sflag [#allocation3], 6
  %992 = vsyncmov %s991
  %s993 = vpop.sfrf %992
  %p994 = scmp.eq.s32.totalorder %s993, 0
  %p995 = pneg %p994
  %997 = shalt.err (%p995)
  %s998 = scalar_lea.sflag [#allocation3], 7
  %999 = vsyncmov %s998
  %s1000 = vpop.sfrf %999
  %p1001 = scmp.eq.s32.totalorder %s1000, 0
  %p1002 = pneg %p1001
  %1004 = shalt.err (%p1002)
  %s1005 = scalar_lea.sflag [#allocation3], 8
  %1006 = vsyncmov %s1005
  %s1007 = vpop.sfrf %1006
  %p1008 = scmp.eq.s32.totalorder %s1007, 0
  %p1009 = pneg %p1008
  %1011 = shalt.err (%p1009)
  %s1012 = scalar_lea.sflag [#allocation3], 9
  %1013 = vsyncmov %s1012
  %s1014 = vpop.sfrf %1013
  %p1015 = scmp.eq.s32.totalorder %s1014, 0
  %p1016 = pneg %p1015
  %1018 = shalt.err (%p1016)
  %s1019 = scalar_lea.sflag [#allocation3], 10
  %1020 = vsyncmov %s1019
  %s1021 = vpop.sfrf %1020
  %p1022 = scmp.eq.s32.totalorder %s1021, 0
  %p1023 = pneg %p1022
  %1025 = shalt.err (%p1023)
  %s1026 = scalar_lea.sflag [#allocation3], 11
  %1027 = vsyncmov %s1026
  %s1028 = vpop.sfrf %1027
  %p1029 = scmp.eq.s32.totalorder %s1028, 0
  %p1030 = pneg %p1029
  %1032 = shalt.err (%p1030)
  %s1033 = scalar_lea.sflag [#allocation3], 12
  %1034 = vsyncmov %s1033
  %s1035 = vpop.sfrf %1034
  %p1036 = scmp.eq.s32.totalorder %s1035, 0
  %p1037 = pneg %p1036
  %1039 = shalt.err (%p1037)
  %s1040 = scalar_lea.sflag [#allocation3], 13
  %1041 = vsyncmov %s1040
  %s1042 = vpop.sfrf %1041
  %p1043 = scmp.eq.s32.totalorder %s1042, 0
  %p1044 = pneg %p1043
  %1046 = shalt.err (%p1044)
  %s1047 = scalar_lea.sflag [#allocation3], 14
  %1048 = vsyncmov %s1047
  %s1049 = vpop.sfrf %1048
  %p1050 = scmp.eq.s32.totalorder %s1049, 0
  %p1051 = pneg %p1050
  %1053 = shalt.err (%p1051)
  %s1054 = scalar_lea.sflag [#allocation3], 15
  %1055 = vsyncmov %s1054
  %s1056 = vpop.sfrf %1055
  %p1057 = scmp.eq.s32.totalorder %s1056, 0
  %p1058 = pneg %p1057
  %1060 = shalt.err (%p1058)
  %s1061 = scalar_lea.sflag [#allocation3], 16
  %1062 = vsyncmov %s1061
  %s1063 = vpop.sfrf %1062
  %p1064 = scmp.eq.s32.totalorder %s1063, 0
  %p1065 = pneg %p1064
  %1067 = shalt.err (%p1065)
  %s1068 = scalar_lea.sflag [#allocation3], 17
  %1069 = vsyncmov %s1068
  %s1070 = vpop.sfrf %1069
  %p1071 = scmp.eq.s32.totalorder %s1070, 0
  %p1072 = pneg %p1071
  %1074 = shalt.err (%p1072)
  %s1075 = scalar_lea.sflag [#allocation3], 18
  %1076 = vsyncmov %s1075
  %s1077 = vpop.sfrf %1076
  %p1078 = scmp.eq.s32.totalorder %s1077, 0
  %p1079 = pneg %p1078
  %1081 = shalt.err (%p1079)
  %s1082 = scalar_lea.sflag [#allocation3], 19
  %1083 = vsyncmov %s1082
  %s1084 = vpop.sfrf %1083
  %p1085 = scmp.eq.s32.totalorder %s1084, 0
  %p1086 = pneg %p1085
  %1088 = shalt.err (%p1086)
  %s1089 = scalar_lea.sflag [#allocation3], 20
  %1090 = vsyncmov %s1089
  %s1091 = vpop.sfrf %1090
  %p1092 = scmp.eq.s32.totalorder %s1091, 0
  %p1093 = pneg %p1092
  %1095 = shalt.err (%p1093)
  %s1096 = scalar_lea.sflag [#allocation3], 21
  %1097 = vsyncmov %s1096
  %s1098 = vpop.sfrf %1097
  %p1099 = scmp.eq.s32.totalorder %s1098, 0
  %p1100 = pneg %p1099
  %1102 = shalt.err (%p1100)
  %s1103 = scalar_lea.sflag [#allocation3], 22
  %1104 = vsyncmov %s1103
  %s1105 = vpop.sfrf %1104
  %p1106 = scmp.eq.s32.totalorder %s1105, 0
  %p1107 = pneg %p1106
  %1109 = shalt.err (%p1107)
  %s1110 = scalar_lea.sflag [#allocation3], 23
  %1111 = vsyncmov %s1110
  %s1112 = vpop.sfrf %1111
  %p1113 = scmp.eq.s32.totalorder %s1112, 0
  %p1114 = pneg %p1113
  %1116 = shalt.err (%p1114)
  %s1117 = scalar_lea.sflag [#allocation3], 24
  %1118 = vsyncmov %s1117
  %s1119 = vpop.sfrf %1118
  %p1120 = scmp.eq.s32.totalorder %s1119, 0
  %p1121 = pneg %p1120
  %1123 = shalt.err (%p1121)
  %s1124 = scalar_lea.sflag [#allocation3], 25
  %1125 = vsyncmov %s1124
  %s1126 = vpop.sfrf %1125
  %p1127 = scmp.eq.s32.totalorder %s1126, 0
  %p1128 = pneg %p1127
  %1130 = shalt.err (%p1128)
  %s1131 = scalar_lea.sflag [#allocation3], 26
  %1132 = vsyncmov %s1131
  %s1133 = vpop.sfrf %1132
  %p1134 = scmp.eq.s32.totalorder %s1133, 0
  %p1135 = pneg %p1134
  %1137 = shalt.err (%p1135)
  %s1138 = scalar_lea.sflag [#allocation3], 27
  %1139 = vsyncmov %s1138
  %s1140 = vpop.sfrf %1139
  %p1141 = scmp.eq.s32.totalorder %s1140, 0
  %p1142 = pneg %p1141
  %1144 = shalt.err (%p1142)
  %s1145 = scalar_lea.sflag [#allocation3], 28
  %1146 = vsyncmov %s1145
  %s1147 = vpop.sfrf %1146
  %p1148 = scmp.eq.s32.totalorder %s1147, 0
  %p1149 = pneg %p1148
  %1151 = shalt.err (%p1149)
  %s1152 = scalar_lea.sflag [#allocation3], 29
  %1153 = vsyncmov %s1152
  %s1154 = vpop.sfrf %1153
  %p1155 = scmp.eq.s32.totalorder %s1154, 0
  %p1156 = pneg %p1155
  %1158 = shalt.err (%p1156)
  %s1159 = scalar_lea.sflag [#allocation3], 30
  %1160 = vsyncmov %s1159
  %s1161 = vpop.sfrf %1160
  %p1162 = scmp.eq.s32.totalorder %s1161, 0
  %p1163 = pneg %p1162
  %1165 = shalt.err (%p1163)
  %s1166 = scalar_lea.sflag [#allocation3], 31
  %1167 = vsyncmov %s1166
  %s1168 = vpop.sfrf %1167
  %p1169 = scmp.eq.s32.totalorder %s1168, 0
  %p1170 = pneg %p1169
  %1172 = shalt.err (%p1170)

</llo_original>
